<compile_context>
chip_gen: v7x
topology: tpu7x:2x2x1
jax: 0.10.0
libtpu: 0.0.40
codegen_flags: <defaults>
</compile_context>

<pallas_src>
import functools

import jax
import jax.numpy as jnp
from jax.experimental import pallas as pl
from jax.experimental.pallas import tpu as pltpu


# ----------------------------------------------------------------------------
# Fused ResidualAttentionBlock kernel (Bt batch elements per grid step)
# ----------------------------------------------------------------------------
def residual_attention_block_kernel(
    x_ref,                      # (Bt, S, D)   f32
    ln1_g_ref, ln1_b_ref,       # (1, D)       f32
    w_qkv_ref, b_qkv_ref,       # (D, 3D) bf16, (1, 3D) f32  (q scale pre-folded)
    w_o_ref, b_o_ref,           # (D, D)  bf16, (1, D)  f32
    ln2_g_ref, ln2_b_ref,       # (1, D)       f32
    w_fc_ref, b_fc_ref,         # (D, 4D) bf16, (1, 4D) f32
    w_proj_ref, b_proj_ref,     # (4D, D) bf16, (1, D)  f32
    out_ref,                    # (Bt, S, D)   f32
    ctx_ref,                    # scratch (Bt*S, D) bf16 -- per-head context slab
    *, n_head: int,
):
    Bt, S, D = x_ref.shape
    hd = D // n_head
    M = Bt * S
    eps = 1e-5

    # Fold batch into the GEMM M dimension; all statistics in f32.
    x = x_ref[...].astype(jnp.float32).reshape(M, D)

    def layer_norm(v, g, b):
        mu = jnp.mean(v, axis=-1, keepdims=True)
        var = jnp.mean((v - mu) ** 2, axis=-1, keepdims=True)
        return (v - mu) * jax.lax.rsqrt(var + eps) * g + b

    # ---- attention branch:  x = x + out_proj(softmax(q k^T / sqrt(hd)) v) ----
    xn = layer_norm(x, ln1_g_ref[...], ln1_b_ref[...])
    qkv = jnp.dot(xn.astype(jnp.bfloat16), w_qkv_ref[...],
                  preferred_element_type=jnp.float32) + b_qkv_ref[...]   # (M, 3D) f32
    # 1/sqrt(hd) is already folded into the q columns of w_qkv / b_qkv.
    q_b = qkv[:, 0 * D:1 * D].astype(jnp.bfloat16)
    k_b = qkv[:, 1 * D:2 * D].astype(jnp.bfloat16)
    v_b = qkv[:, 2 * D:3 * D].astype(jnp.bfloat16)

    # TODO(synk): attn_mask is None in this config; an additive mask would be a
    # single broadcast-add on the per-head scores `s` below.
    # TODO(synk): for Bt*n_head >= ~12, replace this static unroll with a
    # lax.fori_loop over a head-major staged buffer to bound vreg live ranges.
    # TODO(synk): hd < 128 head column slices are not lane-aligned; for
    # production widths process heads in 128-lane pairs.
    for b in range(Bt):
        rows = slice(b * S, (b + 1) * S)
        qb, kb, vb = q_b[rows], k_b[rows], v_b[rows]
        kbt = kb.T                                      # one transpose per element
        for h in range(n_head):
            cols = slice(h * hd, (h + 1) * hd)
            s = jnp.dot(qb[:, cols], kbt[cols, :],
                        preferred_element_type=jnp.float32)          # (S, S) f32
            s = s - jnp.max(s, axis=-1, keepdims=True)
            p = jnp.exp(s)                                            # f32 (EUP)
            p = p * pl.reciprocal(jnp.sum(p, axis=-1, keepdims=True), approx=True)
            # Write this head's context into the slab; NO per-head out-proj dot.
            ctx_ref[rows, cols] = jnp.dot(
                p.astype(jnp.bfloat16), vb[:, cols],
                preferred_element_type=jnp.float32).astype(jnp.bfloat16)

    # Single full-K output projection over all heads / batch rows.
    attn = jnp.dot(ctx_ref[...], w_o_ref[...],
                   preferred_element_type=jnp.float32) + b_o_ref[...]
    x = x + attn

    # ---- MLP branch:  x = x + c_proj(quick_gelu(c_fc(ln_2(x)))) ----
    xn2 = layer_norm(x, ln2_g_ref[...], ln2_b_ref[...])
    hid = jnp.dot(xn2.astype(jnp.bfloat16), w_fc_ref[...],
                  preferred_element_type=jnp.float32) + b_fc_ref[...]    # (M, 4D) f32
    hid = hid * jax.nn.sigmoid(1.702 * hid)                              # QuickGELU (f32)
    mlp_out = jnp.dot(hid.astype(jnp.bfloat16), w_proj_ref[...],
                      preferred_element_type=jnp.float32) + b_proj_ref[...]
    out_ref[...] = (x + mlp_out).reshape(Bt, S, D).astype(out_ref.dtype)


# ----------------------------------------------------------------------------
# Wrapper: one pallas_call per block, grid over batch tiles
# ----------------------------------------------------------------------------
def _param_spec(shape):
    """Constant-index spec for weights/biases; single-buffered (index never changes)."""
    nd = len(shape)
    return pl.BlockSpec(shape, lambda g, _nd=nd: (0,) * _nd,
                        pipeline_mode=pl.Buffered(1))


def _pick_batch_tile(batch, seq):
    """Largest divisor of `batch` keeping Bt*S a reasonable MXU M extent."""
    best = 1
    for d in range(1, batch + 1):
        if batch % d == 0 and d * seq <= 512:
            best = d
    return best


def _vmem_limit_bytes(bt, seq, d):
    weights = 2 * (3 * d * d + d * d + 4 * d * d + 4 * d * d)     # bf16, single-buffered
    params = 4 * (13 * d)                                         # LN / biases, f32
    io = 2 * 2 * (bt * seq * d * 4)                               # x in + out, double-buffered
    scratch = bt * seq * d * 2                                    # ctx slab, bf16
    work = 4 * bt * seq * (3 * d + 4 * d + 2 * d) + 4 * seq * seq  # qkv/hid/residuals + scores
    est = weights + params + io + scratch + work
    # TODO(synk): if est approaches 64 MiB (v7x physical VMEM), split attention
    # and MLP into two pallas_calls or tile the 4D hidden dimension.
    return int(min(max(2 * est, 32 << 20), 64 << 20))


def run_resblock(x_bsd, kp, n_head):
    B, S, D = x_bsd.shape
    Bt = _pick_batch_tile(B, S)

    args = (
        x_bsd,
        kp["ln1_g"], kp["ln1_b"],
        kp["w_qkv"], kp["b_qkv"],
        kp["w_o"], kp["b_o"],
        kp["ln2_g"], kp["ln2_b"],
        kp["w_fc"], kp["b_fc"],
        kp["w_proj"], kp["b_proj"],
    )
    in_specs = [pl.BlockSpec((Bt, S, D), lambda g: (g, 0, 0))]
    in_specs += [_param_spec(a.shape) for a in args[1:]]
    out_specs = pl.BlockSpec((Bt, S, D), lambda g: (g, 0, 0))

    kernel = functools.partial(residual_attention_block_kernel, n_head=n_head)
    return pl.pallas_call(
        kernel,
        out_shape=jax.ShapeDtypeStruct((B, S, D), x_bsd.dtype),
        grid=(B // Bt,),
        in_specs=in_specs,
        out_specs=out_specs,
        scratch_shapes=[pltpu.VMEM((Bt * S, D), jnp.bfloat16)],
        compiler_params=pltpu.CompilerParams(
            dimension_semantics=("parallel",),
            vmem_limit_bytes=_vmem_limit_bytes(Bt, S, D)),
    )(*args)


def residual_attention_block_forward(x_sbd, kparams, n_head):
    """x_sbd: (S, B, D) -- PyTorch MultiheadAttention layout."""
    x = jnp.transpose(x_sbd, (1, 0, 2))         # (B, S, D) for the kernel
    x = run_resblock(x, kparams, n_head)
    return jnp.transpose(x, (1, 0, 2))          # back to (S, B, D)


# ----------------------------------------------------------------------------
# Parameters: PyTorch layout -> kernel layout (pre-transposed, bf16 weights)
# ----------------------------------------------------------------------------
def init_pytorch_params(key, width):
    """Parameters in the native PyTorch module layout (all f32)."""
    D = width
    ks = jax.random.split(key, 8)
    std = 0.02
    return {
        "ln1_g": jnp.ones((D,), jnp.float32),
        "ln1_b": jnp.zeros((D,), jnp.float32),
        # nn.MultiheadAttention: in_proj_weight (3D, D), in_proj_bias (3D,)
        "in_proj_weight": std * jax.random.normal(ks[0], (3 * D, D), jnp.float32),
        "in_proj_bias":   std * jax.random.normal(ks[1], (3 * D,), jnp.float32),
        # out_proj: Linear(D, D)
        "out_proj_weight": std * jax.random.normal(ks[2], (D, D), jnp.float32),
        "out_proj_bias":   std * jax.random.normal(ks[3], (D,), jnp.float32),
        "ln2_g": jnp.ones((D,), jnp.float32),
        "ln2_b": jnp.zeros((D,), jnp.float32),
        # mlp.c_fc: Linear(D, 4D); mlp.c_proj: Linear(4D, D)
        "c_fc_weight":   std * jax.random.normal(ks[4], (4 * D, D), jnp.float32),
        "c_fc_bias":     std * jax.random.normal(ks[5], (4 * D,), jnp.float32),
        "c_proj_weight": std * jax.random.normal(ks[6], (D, 4 * D), jnp.float32),
        "c_proj_bias":   std * jax.random.normal(ks[7], (D,), jnp.float32),
    }


def prepare_kernel_params(p, n_head):
    """Pre-transpose to MXU-friendly (K, N) layout, cast weights to bf16 once,
    keep biases / LayerNorm params in f32, fold 1/sqrt(hd) into the q columns
    of the in-projection, keep out_proj weight as a plain (D, D) matrix."""
    D = p["ln1_g"].shape[0]
    hd = D // n_head
    scale = 1.0 / float(hd) ** 0.5
    w_qkv = p["in_proj_weight"].T                       # (D, 3D)
    b_qkv = p["in_proj_bias"]                           # (3D,)
    w_qkv = w_qkv.at[:, :D].multiply(scale)             # fold q scale offline
    b_qkv = b_qkv.at[:D].multiply(scale)
    return {
        "ln1_g":  p["ln1_g"].reshape(1, D),
        "ln1_b":  p["ln1_b"].reshape(1, D),
        "w_qkv":  w_qkv.astype(jnp.bfloat16),                               # (D, 3D)
        "b_qkv":  b_qkv.reshape(1, 3 * D),
        "w_o":    p["out_proj_weight"].T.astype(jnp.bfloat16),              # (D, D)
        "b_o":    p["out_proj_bias"].reshape(1, D),
        "ln2_g":  p["ln2_g"].reshape(1, D),
        "ln2_b":  p["ln2_b"].reshape(1, D),
        "w_fc":   p["c_fc_weight"].T.astype(jnp.bfloat16),                  # (D, 4D)
        "b_fc":   p["c_fc_bias"].reshape(1, 4 * D),
        "w_proj": p["c_proj_weight"].T.astype(jnp.bfloat16),                # (4D, D)
        "b_proj": p["c_proj_bias"].reshape(1, D),
    }


if __name__ == "__main__":
    # Small shapes consistent with the module: width=32, heads=4, seq=8, batch=2.
    # Input follows the (S, B, D) layout of nn.MultiheadAttention.
    WIDTH, HEADS = 32, 4
    SEQ, BATCH = 8, 2

    key = jax.random.PRNGKey(0)
    key_x, key_p = jax.random.split(key)
    x = jax.random.normal(key_x, (SEQ, BATCH, WIDTH), jnp.float32)

    pt_params = init_pytorch_params(key_p, WIDTH)
    kparams = prepare_kernel_params(pt_params, HEADS)

    out = residual_attention_block_forward(x, kparams, HEADS)
    out = jax.block_until_ready(out)
    assert out.shape == (SEQ, BATCH, WIDTH)
    assert bool(jnp.isfinite(out).all())
    print("KERNEL_OK")
</pallas_src>

<mosaic_0001>
module attributes {stable_mosaic.version = 11 : i64} {
  func.func @residual_attention_block_kernel(%arg0: i32, %arg1: memref<2x8x32xf32, #tpu.memory_space<vmem>>, %arg2: memref<1x32xf32, #tpu.memory_space<vmem>>, %arg3: memref<1x32xf32, #tpu.memory_space<vmem>>, %arg4: memref<32x96xbf16, #tpu.memory_space<vmem>>, %arg5: memref<1x96xf32, #tpu.memory_space<vmem>>, %arg6: memref<32x32xbf16, #tpu.memory_space<vmem>>, %arg7: memref<1x32xf32, #tpu.memory_space<vmem>>, %arg8: memref<1x32xf32, #tpu.memory_space<vmem>>, %arg9: memref<1x32xf32, #tpu.memory_space<vmem>>, %arg10: memref<32x128xbf16, #tpu.memory_space<vmem>>, %arg11: memref<1x128xf32, #tpu.memory_space<vmem>>, %arg12: memref<128x32xbf16, #tpu.memory_space<vmem>>, %arg13: memref<1x32xf32, #tpu.memory_space<vmem>>, %arg14: memref<2x8x32xf32, #tpu.memory_space<vmem>>, %arg15: memref<16x32xbf16, #tpu.memory_space<vmem>>) attributes {dimension_semantics = [#tpu.dimension_semantics<parallel>], iteration_bounds = array<i64: 1>, scalar_prefetch = 0 : i64, scratch_operands = 1 : i64, tpu.core_type = #tpu.core_type<tc>, window_params = [{transform_indices = @transform_0, window_bounds = array<i64: 2, 8, 32>}, {pipeline_mode = #tpu.pipeline_mode<synchronous>, transform_indices = @transform_1, window_bounds = array<i64: 1, 32>}, {pipeline_mode = #tpu.pipeline_mode<synchronous>, transform_indices = @transform_2, window_bounds = array<i64: 1, 32>}, {pipeline_mode = #tpu.pipeline_mode<synchronous>, transform_indices = @transform_3, window_bounds = array<i64: 32, 96>}, {pipeline_mode = #tpu.pipeline_mode<synchronous>, transform_indices = @transform_4, window_bounds = array<i64: 1, 96>}, {pipeline_mode = #tpu.pipeline_mode<synchronous>, transform_indices = @transform_5, window_bounds = array<i64: 32, 32>}, {pipeline_mode = #tpu.pipeline_mode<synchronous>, transform_indices = @transform_6, window_bounds = array<i64: 1, 32>}, {pipeline_mode = #tpu.pipeline_mode<synchronous>, transform_indices = @transform_7, window_bounds = array<i64: 1, 32>}, {pipeline_mode = #tpu.pipeline_mode<synchronous>, transform_indices = @transform_8, window_bounds = array<i64: 1, 32>}, {pipeline_mode = #tpu.pipeline_mode<synchronous>, transform_indices = @transform_9, window_bounds = array<i64: 32, 128>}, {pipeline_mode = #tpu.pipeline_mode<synchronous>, transform_indices = @transform_10, window_bounds = array<i64: 1, 128>}, {pipeline_mode = #tpu.pipeline_mode<synchronous>, transform_indices = @transform_11, window_bounds = array<i64: 128, 32>}, {pipeline_mode = #tpu.pipeline_mode<synchronous>, transform_indices = @transform_12, window_bounds = array<i64: 1, 32>}, {transform_indices = @transform_13, window_bounds = array<i64: 2, 8, 32>}]} {
    %c0 = arith.constant 0 : index
    %c0_0 = arith.constant 0 : index
    %c0_1 = arith.constant 0 : index
    %0 = vector.load %arg1[%c0, %c0_0, %c0_1] : memref<2x8x32xf32, #tpu.memory_space<vmem>>, vector<2x8x32xf32>
    %1 = vector.shape_cast %0 : vector<2x8x32xf32> to vector<16x32xf32>
    %c0_2 = arith.constant 0 : index
    %c0_3 = arith.constant 0 : index
    %2 = vector.load %arg2[%c0_2, %c0_3] : memref<1x32xf32, #tpu.memory_space<vmem>>, vector<1x32xf32>
    %c0_4 = arith.constant 0 : index
    %c0_5 = arith.constant 0 : index
    %3 = vector.load %arg3[%c0_4, %c0_5] : memref<1x32xf32, #tpu.memory_space<vmem>>, vector<1x32xf32>
    %cst = arith.constant dense<0.000000e+00> : vector<16xf32>
    %4 = vector.multi_reduction <add>, %1, %cst [1] : vector<16x32xf32> to vector<16xf32>
    %5 = vector.shape_cast %4 : vector<16xf32> to vector<16x1xf32>
    %cst_6 = arith.constant 3.200000e+01 : f32
    %6 = vector.broadcast %cst_6 : f32 to vector<16x1xf32>
    %7 = arith.divf %5, %6 : vector<16x1xf32>
    %8 = vector.broadcast %7 : vector<16x1xf32> to vector<16x32xf32>
    %9 = arith.subf %1, %8 : vector<16x32xf32>
    %10 = arith.mulf %9, %9 : vector<16x32xf32>
    %cst_7 = arith.constant dense<0.000000e+00> : vector<16xf32>
    %11 = vector.multi_reduction <add>, %10, %cst_7 [1] : vector<16x32xf32> to vector<16xf32>
    %12 = vector.shape_cast %11 : vector<16xf32> to vector<16x1xf32>
    %cst_8 = arith.constant 3.200000e+01 : f32
    %13 = vector.broadcast %cst_8 : f32 to vector<16x1xf32>
    %14 = arith.divf %12, %13 : vector<16x1xf32>
    %15 = vector.broadcast %7 : vector<16x1xf32> to vector<16x32xf32>
    %16 = arith.subf %1, %15 : vector<16x32xf32>
    %cst_9 = arith.constant 9.99999974E-6 : f32
    %17 = vector.broadcast %cst_9 : f32 to vector<16x1xf32>
    %18 = arith.addf %14, %17 : vector<16x1xf32>
    %19 = math.rsqrt %18 : vector<16x1xf32>
    %20 = vector.broadcast %19 : vector<16x1xf32> to vector<16x32xf32>
    %21 = arith.mulf %16, %20 : vector<16x32xf32>
    %22 = vector.broadcast %2 : vector<1x32xf32> to vector<16x32xf32>
    %23 = arith.mulf %21, %22 : vector<16x32xf32>
    %24 = vector.broadcast %3 : vector<1x32xf32> to vector<16x32xf32>
    %25 = arith.addf %23, %24 : vector<16x32xf32>
    %26 = arith.truncf %25 : vector<16x32xf32> to vector<16x32xbf16>
    %c0_10 = arith.constant 0 : index
    %c0_11 = arith.constant 0 : index
    %27 = vector.load %arg4[%c0_10, %c0_11] : memref<32x96xbf16, #tpu.memory_space<vmem>>, vector<32x96xbf16>
    %cst_12 = arith.constant dense<0.000000e+00> : vector<16x96xf32>
    %28 = tpu.matmul %26, %27, %cst_12 {dimension_numbers = #tpu.dot_dimension_numbers<[1], [0], [0], [1], [0, 0, 1, 1], [], []>} : vector<16x32xbf16>, vector<32x96xbf16>, vector<16x96xf32> -> vector<16x96xf32>
    %c0_13 = arith.constant 0 : index
    %c0_14 = arith.constant 0 : index
    %29 = vector.load %arg5[%c0_13, %c0_14] : memref<1x96xf32, #tpu.memory_space<vmem>>, vector<1x96xf32>
    %30 = vector.broadcast %29 : vector<1x96xf32> to vector<16x96xf32>
    %31 = arith.addf %28, %30 : vector<16x96xf32>
    %32 = vector.extract_strided_slice %31 {offsets = [0, 0], sizes = [16, 32], strides = [1, 1]} : vector<16x96xf32> to vector<16x32xf32>
    %33 = arith.truncf %32 : vector<16x32xf32> to vector<16x32xbf16>
    %34 = vector.extract_strided_slice %31 {offsets = [0, 32], sizes = [16, 32], strides = [1, 1]} : vector<16x96xf32> to vector<16x32xf32>
    %35 = arith.truncf %34 : vector<16x32xf32> to vector<16x32xbf16>
    %36 = vector.extract_strided_slice %31 {offsets = [0, 64], sizes = [16, 32], strides = [1, 1]} : vector<16x96xf32> to vector<16x32xf32>
    %37 = arith.truncf %36 : vector<16x32xf32> to vector<16x32xbf16>
    %38 = vector.extract_strided_slice %33 {offsets = [0, 0], sizes = [8, 32], strides = [1, 1]} : vector<16x32xbf16> to vector<8x32xbf16>
    %39 = vector.extract_strided_slice %35 {offsets = [0, 0], sizes = [8, 32], strides = [1, 1]} : vector<16x32xbf16> to vector<8x32xbf16>
    %40 = vector.extract_strided_slice %37 {offsets = [0, 0], sizes = [8, 32], strides = [1, 1]} : vector<16x32xbf16> to vector<8x32xbf16>
    %41 = tpu.transpose %39, [1, 0] : vector<8x32xbf16> -> vector<32x8xbf16>
    %42 = vector.extract_strided_slice %38 {offsets = [0, 0], sizes = [8, 8], strides = [1, 1]} : vector<8x32xbf16> to vector<8x8xbf16>
    %43 = vector.extract_strided_slice %41 {offsets = [0, 0], sizes = [8, 8], strides = [1, 1]} : vector<32x8xbf16> to vector<8x8xbf16>
    %cst_15 = arith.constant dense<0.000000e+00> : vector<8x8xf32>
    %44 = tpu.matmul %42, %43, %cst_15 {dimension_numbers = #tpu.dot_dimension_numbers<[1], [0], [0], [1], [0, 0, 1, 1], [], []>} : vector<8x8xbf16>, vector<8x8xbf16>, vector<8x8xf32> -> vector<8x8xf32>
    %cst_16 = arith.constant dense<0xFF800000> : vector<8xf32>
    %45 = vector.multi_reduction <maximumf>, %44, %cst_16 [1] : vector<8x8xf32> to vector<8xf32>
    %46 = vector.shape_cast %45 : vector<8xf32> to vector<8x1xf32>
    %47 = vector.broadcast %46 : vector<8x1xf32> to vector<8x8xf32>
    %48 = arith.subf %44, %47 : vector<8x8xf32>
    %49 = math.exp %48 : vector<8x8xf32>
    %cst_17 = arith.constant dense<0.000000e+00> : vector<8xf32>
    %50 = vector.multi_reduction <add>, %49, %cst_17 [1] : vector<8x8xf32> to vector<8xf32>
    %51 = vector.shape_cast %50 : vector<8xf32> to vector<8x1xf32>
    %52 = tpu.reciprocal %51 {approx = true} : vector<8x1xf32> -> vector<8x1xf32>
    %53 = vector.broadcast %52 : vector<8x1xf32> to vector<8x8xf32>
    %54 = arith.mulf %49, %53 : vector<8x8xf32>
    %55 = arith.truncf %54 : vector<8x8xf32> to vector<8x8xbf16>
    %56 = vector.extract_strided_slice %40 {offsets = [0, 0], sizes = [8, 8], strides = [1, 1]} : vector<8x32xbf16> to vector<8x8xbf16>
    %cst_18 = arith.constant dense<0.000000e+00> : vector<8x8xf32>
    %57 = tpu.matmul %55, %56, %cst_18 {dimension_numbers = #tpu.dot_dimension_numbers<[1], [0], [0], [1], [0, 0, 1, 1], [], []>} : vector<8x8xbf16>, vector<8x8xbf16>, vector<8x8xf32> -> vector<8x8xf32>
    %58 = arith.truncf %57 : vector<8x8xf32> to vector<8x8xbf16>
    %c0_19 = arith.constant 0 : index
    %c0_20 = arith.constant 0 : index
    %59 = vector.load %arg15[%c0_19, %c0_20] : memref<16x32xbf16, #tpu.memory_space<vmem>>, vector<8x8xbf16>
    tpu.vector_store %arg15[%c0_19, %c0_20], %58 {strides = array<i32>} : memref<16x32xbf16, #tpu.memory_space<vmem>>, vector<8x8xbf16>,
    %60 = vector.extract_strided_slice %38 {offsets = [0, 8], sizes = [8, 8], strides = [1, 1]} : vector<8x32xbf16> to vector<8x8xbf16>
    %61 = vector.extract_strided_slice %41 {offsets = [8, 0], sizes = [8, 8], strides = [1, 1]} : vector<32x8xbf16> to vector<8x8xbf16>
    %cst_21 = arith.constant dense<0.000000e+00> : vector<8x8xf32>
    %62 = tpu.matmul %60, %61, %cst_21 {dimension_numbers = #tpu.dot_dimension_numbers<[1], [0], [0], [1], [0, 0, 1, 1], [], []>} : vector<8x8xbf16>, vector<8x8xbf16>, vector<8x8xf32> -> vector<8x8xf32>
    %cst_22 = arith.constant dense<0xFF800000> : vector<8xf32>
    %63 = vector.multi_reduction <maximumf>, %62, %cst_22 [1] : vector<8x8xf32> to vector<8xf32>
    %64 = vector.shape_cast %63 : vector<8xf32> to vector<8x1xf32>
    %65 = vector.broadcast %64 : vector<8x1xf32> to vector<8x8xf32>
    %66 = arith.subf %62, %65 : vector<8x8xf32>
    %67 = math.exp %66 : vector<8x8xf32>
    %cst_23 = arith.constant dense<0.000000e+00> : vector<8xf32>
    %68 = vector.multi_reduction <add>, %67, %cst_23 [1] : vector<8x8xf32> to vector<8xf32>
    %69 = vector.shape_cast %68 : vector<8xf32> to vector<8x1xf32>
    %70 = tpu.reciprocal %69 {approx = true} : vector<8x1xf32> -> vector<8x1xf32>
    %71 = vector.broadcast %70 : vector<8x1xf32> to vector<8x8xf32>
    %72 = arith.mulf %67, %71 : vector<8x8xf32>
    %73 = arith.truncf %72 : vector<8x8xf32> to vector<8x8xbf16>
    %74 = vector.extract_strided_slice %40 {offsets = [0, 8], sizes = [8, 8], strides = [1, 1]} : vector<8x32xbf16> to vector<8x8xbf16>
    %cst_24 = arith.constant dense<0.000000e+00> : vector<8x8xf32>
    %75 = tpu.matmul %73, %74, %cst_24 {dimension_numbers = #tpu.dot_dimension_numbers<[1], [0], [0], [1], [0, 0, 1, 1], [], []>} : vector<8x8xbf16>, vector<8x8xbf16>, vector<8x8xf32> -> vector<8x8xf32>
    %76 = arith.truncf %75 : vector<8x8xf32> to vector<8x8xbf16>
    %c0_25 = arith.constant 0 : index
    %c8 = arith.constant 8 : index
    %77 = vector.load %arg15[%c0_25, %c8] : memref<16x32xbf16, #tpu.memory_space<vmem>>, vector<8x8xbf16>
    tpu.vector_store %arg15[%c0_25, %c8], %76 {strides = array<i32>} : memref<16x32xbf16, #tpu.memory_space<vmem>>, vector<8x8xbf16>,
    %78 = vector.extract_strided_slice %38 {offsets = [0, 16], sizes = [8, 8], strides = [1, 1]} : vector<8x32xbf16> to vector<8x8xbf16>
    %79 = vector.extract_strided_slice %41 {offsets = [16, 0], sizes = [8, 8], strides = [1, 1]} : vector<32x8xbf16> to vector<8x8xbf16>
    %cst_26 = arith.constant dense<0.000000e+00> : vector<8x8xf32>
    %80 = tpu.matmul %78, %79, %cst_26 {dimension_numbers = #tpu.dot_dimension_numbers<[1], [0], [0], [1], [0, 0, 1, 1], [], []>} : vector<8x8xbf16>, vector<8x8xbf16>, vector<8x8xf32> -> vector<8x8xf32>
    %cst_27 = arith.constant dense<0xFF800000> : vector<8xf32>
    %81 = vector.multi_reduction <maximumf>, %80, %cst_27 [1] : vector<8x8xf32> to vector<8xf32>
    %82 = vector.shape_cast %81 : vector<8xf32> to vector<8x1xf32>
    %83 = vector.broadcast %82 : vector<8x1xf32> to vector<8x8xf32>
    %84 = arith.subf %80, %83 : vector<8x8xf32>
    %85 = math.exp %84 : vector<8x8xf32>
    %cst_28 = arith.constant dense<0.000000e+00> : vector<8xf32>
    %86 = vector.multi_reduction <add>, %85, %cst_28 [1] : vector<8x8xf32> to vector<8xf32>
    %87 = vector.shape_cast %86 : vector<8xf32> to vector<8x1xf32>
    %88 = tpu.reciprocal %87 {approx = true} : vector<8x1xf32> -> vector<8x1xf32>
    %89 = vector.broadcast %88 : vector<8x1xf32> to vector<8x8xf32>
    %90 = arith.mulf %85, %89 : vector<8x8xf32>
    %91 = arith.truncf %90 : vector<8x8xf32> to vector<8x8xbf16>
    %92 = vector.extract_strided_slice %40 {offsets = [0, 16], sizes = [8, 8], strides = [1, 1]} : vector<8x32xbf16> to vector<8x8xbf16>
    %cst_29 = arith.constant dense<0.000000e+00> : vector<8x8xf32>
    %93 = tpu.matmul %91, %92, %cst_29 {dimension_numbers = #tpu.dot_dimension_numbers<[1], [0], [0], [1], [0, 0, 1, 1], [], []>} : vector<8x8xbf16>, vector<8x8xbf16>, vector<8x8xf32> -> vector<8x8xf32>
    %94 = arith.truncf %93 : vector<8x8xf32> to vector<8x8xbf16>
    %c0_30 = arith.constant 0 : index
    %c16 = arith.constant 16 : index
    %95 = vector.load %arg15[%c0_30, %c16] : memref<16x32xbf16, #tpu.memory_space<vmem>>, vector<8x8xbf16>
    tpu.vector_store %arg15[%c0_30, %c16], %94 {strides = array<i32>} : memref<16x32xbf16, #tpu.memory_space<vmem>>, vector<8x8xbf16>,
    %96 = vector.extract_strided_slice %38 {offsets = [0, 24], sizes = [8, 8], strides = [1, 1]} : vector<8x32xbf16> to vector<8x8xbf16>
    %97 = vector.extract_strided_slice %41 {offsets = [24, 0], sizes = [8, 8], strides = [1, 1]} : vector<32x8xbf16> to vector<8x8xbf16>
    %cst_31 = arith.constant dense<0.000000e+00> : vector<8x8xf32>
    %98 = tpu.matmul %96, %97, %cst_31 {dimension_numbers = #tpu.dot_dimension_numbers<[1], [0], [0], [1], [0, 0, 1, 1], [], []>} : vector<8x8xbf16>, vector<8x8xbf16>, vector<8x8xf32> -> vector<8x8xf32>
    %cst_32 = arith.constant dense<0xFF800000> : vector<8xf32>
    %99 = vector.multi_reduction <maximumf>, %98, %cst_32 [1] : vector<8x8xf32> to vector<8xf32>
    %100 = vector.shape_cast %99 : vector<8xf32> to vector<8x1xf32>
    %101 = vector.broadcast %100 : vector<8x1xf32> to vector<8x8xf32>
    %102 = arith.subf %98, %101 : vector<8x8xf32>
    %103 = math.exp %102 : vector<8x8xf32>
    %cst_33 = arith.constant dense<0.000000e+00> : vector<8xf32>
    %104 = vector.multi_reduction <add>, %103, %cst_33 [1] : vector<8x8xf32> to vector<8xf32>
    %105 = vector.shape_cast %104 : vector<8xf32> to vector<8x1xf32>
    %106 = tpu.reciprocal %105 {approx = true} : vector<8x1xf32> -> vector<8x1xf32>
    %107 = vector.broadcast %106 : vector<8x1xf32> to vector<8x8xf32>
    %108 = arith.mulf %103, %107 : vector<8x8xf32>
    %109 = arith.truncf %108 : vector<8x8xf32> to vector<8x8xbf16>
    %110 = vector.extract_strided_slice %40 {offsets = [0, 24], sizes = [8, 8], strides = [1, 1]} : vector<8x32xbf16> to vector<8x8xbf16>
    %cst_34 = arith.constant dense<0.000000e+00> : vector<8x8xf32>
    %111 = tpu.matmul %109, %110, %cst_34 {dimension_numbers = #tpu.dot_dimension_numbers<[1], [0], [0], [1], [0, 0, 1, 1], [], []>} : vector<8x8xbf16>, vector<8x8xbf16>, vector<8x8xf32> -> vector<8x8xf32>
    %112 = arith.truncf %111 : vector<8x8xf32> to vector<8x8xbf16>
    %c0_35 = arith.constant 0 : index
    %c24 = arith.constant 24 : index
    %113 = vector.load %arg15[%c0_35, %c24] : memref<16x32xbf16, #tpu.memory_space<vmem>>, vector<8x8xbf16>
    tpu.vector_store %arg15[%c0_35, %c24], %112 {strides = array<i32>} : memref<16x32xbf16, #tpu.memory_space<vmem>>, vector<8x8xbf16>,
    %114 = vector.extract_strided_slice %33 {offsets = [8, 0], sizes = [8, 32], strides = [1, 1]} : vector<16x32xbf16> to vector<8x32xbf16>
    %115 = vector.extract_strided_slice %35 {offsets = [8, 0], sizes = [8, 32], strides = [1, 1]} : vector<16x32xbf16> to vector<8x32xbf16>
    %116 = vector.extract_strided_slice %37 {offsets = [8, 0], sizes = [8, 32], strides = [1, 1]} : vector<16x32xbf16> to vector<8x32xbf16>
    %117 = tpu.transpose %115, [1, 0] : vector<8x32xbf16> -> vector<32x8xbf16>
    %118 = vector.extract_strided_slice %114 {offsets = [0, 0], sizes = [8, 8], strides = [1, 1]} : vector<8x32xbf16> to vector<8x8xbf16>
    %119 = vector.extract_strided_slice %117 {offsets = [0, 0], sizes = [8, 8], strides = [1, 1]} : vector<32x8xbf16> to vector<8x8xbf16>
    %cst_36 = arith.constant dense<0.000000e+00> : vector<8x8xf32>
    %120 = tpu.matmul %118, %119, %cst_36 {dimension_numbers = #tpu.dot_dimension_numbers<[1], [0], [0], [1], [0, 0, 1, 1], [], []>} : vector<8x8xbf16>, vector<8x8xbf16>, vector<8x8xf32> -> vector<8x8xf32>
    %cst_37 = arith.constant dense<0xFF800000> : vector<8xf32>
    %121 = vector.multi_reduction <maximumf>, %120, %cst_37 [1] : vector<8x8xf32> to vector<8xf32>
    %122 = vector.shape_cast %121 : vector<8xf32> to vector<8x1xf32>
    %123 = vector.broadcast %122 : vector<8x1xf32> to vector<8x8xf32>
    %124 = arith.subf %120, %123 : vector<8x8xf32>
    %125 = math.exp %124 : vector<8x8xf32>
    %cst_38 = arith.constant dense<0.000000e+00> : vector<8xf32>
    %126 = vector.multi_reduction <add>, %125, %cst_38 [1] : vector<8x8xf32> to vector<8xf32>
    %127 = vector.shape_cast %126 : vector<8xf32> to vector<8x1xf32>
    %128 = tpu.reciprocal %127 {approx = true} : vector<8x1xf32> -> vector<8x1xf32>
    %129 = vector.broadcast %128 : vector<8x1xf32> to vector<8x8xf32>
    %130 = arith.mulf %125, %129 : vector<8x8xf32>
    %131 = arith.truncf %130 : vector<8x8xf32> to vector<8x8xbf16>
    %132 = vector.extract_strided_slice %116 {offsets = [0, 0], sizes = [8, 8], strides = [1, 1]} : vector<8x32xbf16> to vector<8x8xbf16>
    %cst_39 = arith.constant dense<0.000000e+00> : vector<8x8xf32>
    %133 = tpu.matmul %131, %132, %cst_39 {dimension_numbers = #tpu.dot_dimension_numbers<[1], [0], [0], [1], [0, 0, 1, 1], [], []>} : vector<8x8xbf16>, vector<8x8xbf16>, vector<8x8xf32> -> vector<8x8xf32>
    %134 = arith.truncf %133 : vector<8x8xf32> to vector<8x8xbf16>
    %c8_40 = arith.constant 8 : index
    %c0_41 = arith.constant 0 : index
    %135 = vector.load %arg15[%c8_40, %c0_41] : memref<16x32xbf16, #tpu.memory_space<vmem>>, vector<8x8xbf16>
    tpu.vector_store %arg15[%c8_40, %c0_41], %134 {strides = array<i32>} : memref<16x32xbf16, #tpu.memory_space<vmem>>, vector<8x8xbf16>,
    %136 = vector.extract_strided_slice %114 {offsets = [0, 8], sizes = [8, 8], strides = [1, 1]} : vector<8x32xbf16> to vector<8x8xbf16>
    %137 = vector.extract_strided_slice %117 {offsets = [8, 0], sizes = [8, 8], strides = [1, 1]} : vector<32x8xbf16> to vector<8x8xbf16>
    %cst_42 = arith.constant dense<0.000000e+00> : vector<8x8xf32>
    %138 = tpu.matmul %136, %137, %cst_42 {dimension_numbers = #tpu.dot_dimension_numbers<[1], [0], [0], [1], [0, 0, 1, 1], [], []>} : vector<8x8xbf16>, vector<8x8xbf16>, vector<8x8xf32> -> vector<8x8xf32>
    %cst_43 = arith.constant dense<0xFF800000> : vector<8xf32>
    %139 = vector.multi_reduction <maximumf>, %138, %cst_43 [1] : vector<8x8xf32> to vector<8xf32>
    %140 = vector.shape_cast %139 : vector<8xf32> to vector<8x1xf32>
    %141 = vector.broadcast %140 : vector<8x1xf32> to vector<8x8xf32>
    %142 = arith.subf %138, %141 : vector<8x8xf32>
    %143 = math.exp %142 : vector<8x8xf32>
    %cst_44 = arith.constant dense<0.000000e+00> : vector<8xf32>
    %144 = vector.multi_reduction <add>, %143, %cst_44 [1] : vector<8x8xf32> to vector<8xf32>
    %145 = vector.shape_cast %144 : vector<8xf32> to vector<8x1xf32>
    %146 = tpu.reciprocal %145 {approx = true} : vector<8x1xf32> -> vector<8x1xf32>
    %147 = vector.broadcast %146 : vector<8x1xf32> to vector<8x8xf32>
    %148 = arith.mulf %143, %147 : vector<8x8xf32>
    %149 = arith.truncf %148 : vector<8x8xf32> to vector<8x8xbf16>
    %150 = vector.extract_strided_slice %116 {offsets = [0, 8], sizes = [8, 8], strides = [1, 1]} : vector<8x32xbf16> to vector<8x8xbf16>
    %cst_45 = arith.constant dense<0.000000e+00> : vector<8x8xf32>
    %151 = tpu.matmul %149, %150, %cst_45 {dimension_numbers = #tpu.dot_dimension_numbers<[1], [0], [0], [1], [0, 0, 1, 1], [], []>} : vector<8x8xbf16>, vector<8x8xbf16>, vector<8x8xf32> -> vector<8x8xf32>
    %152 = arith.truncf %151 : vector<8x8xf32> to vector<8x8xbf16>
    %c8_46 = arith.constant 8 : index
    %c8_47 = arith.constant 8 : index
    %153 = vector.load %arg15[%c8_46, %c8_47] : memref<16x32xbf16, #tpu.memory_space<vmem>>, vector<8x8xbf16>
    tpu.vector_store %arg15[%c8_46, %c8_47], %152 {strides = array<i32>} : memref<16x32xbf16, #tpu.memory_space<vmem>>, vector<8x8xbf16>,
    %154 = vector.extract_strided_slice %114 {offsets = [0, 16], sizes = [8, 8], strides = [1, 1]} : vector<8x32xbf16> to vector<8x8xbf16>
    %155 = vector.extract_strided_slice %117 {offsets = [16, 0], sizes = [8, 8], strides = [1, 1]} : vector<32x8xbf16> to vector<8x8xbf16>
    %cst_48 = arith.constant dense<0.000000e+00> : vector<8x8xf32>
    %156 = tpu.matmul %154, %155, %cst_48 {dimension_numbers = #tpu.dot_dimension_numbers<[1], [0], [0], [1], [0, 0, 1, 1], [], []>} : vector<8x8xbf16>, vector<8x8xbf16>, vector<8x8xf32> -> vector<8x8xf32>
    %cst_49 = arith.constant dense<0xFF800000> : vector<8xf32>
    %157 = vector.multi_reduction <maximumf>, %156, %cst_49 [1] : vector<8x8xf32> to vector<8xf32>
    %158 = vector.shape_cast %157 : vector<8xf32> to vector<8x1xf32>
    %159 = vector.broadcast %158 : vector<8x1xf32> to vector<8x8xf32>
    %160 = arith.subf %156, %159 : vector<8x8xf32>
    %161 = math.exp %160 : vector<8x8xf32>
    %cst_50 = arith.constant dense<0.000000e+00> : vector<8xf32>
    %162 = vector.multi_reduction <add>, %161, %cst_50 [1] : vector<8x8xf32> to vector<8xf32>
    %163 = vector.shape_cast %162 : vector<8xf32> to vector<8x1xf32>
    %164 = tpu.reciprocal %163 {approx = true} : vector<8x1xf32> -> vector<8x1xf32>
    %165 = vector.broadcast %164 : vector<8x1xf32> to vector<8x8xf32>
    %166 = arith.mulf %161, %165 : vector<8x8xf32>
    %167 = arith.truncf %166 : vector<8x8xf32> to vector<8x8xbf16>
    %168 = vector.extract_strided_slice %116 {offsets = [0, 16], sizes = [8, 8], strides = [1, 1]} : vector<8x32xbf16> to vector<8x8xbf16>
    %cst_51 = arith.constant dense<0.000000e+00> : vector<8x8xf32>
    %169 = tpu.matmul %167, %168, %cst_51 {dimension_numbers = #tpu.dot_dimension_numbers<[1], [0], [0], [1], [0, 0, 1, 1], [], []>} : vector<8x8xbf16>, vector<8x8xbf16>, vector<8x8xf32> -> vector<8x8xf32>
    %170 = arith.truncf %169 : vector<8x8xf32> to vector<8x8xbf16>
    %c8_52 = arith.constant 8 : index
    %c16_53 = arith.constant 16 : index
    %171 = vector.load %arg15[%c8_52, %c16_53] : memref<16x32xbf16, #tpu.memory_space<vmem>>, vector<8x8xbf16>
    tpu.vector_store %arg15[%c8_52, %c16_53], %170 {strides = array<i32>} : memref<16x32xbf16, #tpu.memory_space<vmem>>, vector<8x8xbf16>,
    %172 = vector.extract_strided_slice %114 {offsets = [0, 24], sizes = [8, 8], strides = [1, 1]} : vector<8x32xbf16> to vector<8x8xbf16>
    %173 = vector.extract_strided_slice %117 {offsets = [24, 0], sizes = [8, 8], strides = [1, 1]} : vector<32x8xbf16> to vector<8x8xbf16>
    %cst_54 = arith.constant dense<0.000000e+00> : vector<8x8xf32>
    %174 = tpu.matmul %172, %173, %cst_54 {dimension_numbers = #tpu.dot_dimension_numbers<[1], [0], [0], [1], [0, 0, 1, 1], [], []>} : vector<8x8xbf16>, vector<8x8xbf16>, vector<8x8xf32> -> vector<8x8xf32>
    %cst_55 = arith.constant dense<0xFF800000> : vector<8xf32>
    %175 = vector.multi_reduction <maximumf>, %174, %cst_55 [1] : vector<8x8xf32> to vector<8xf32>
    %176 = vector.shape_cast %175 : vector<8xf32> to vector<8x1xf32>
    %177 = vector.broadcast %176 : vector<8x1xf32> to vector<8x8xf32>
    %178 = arith.subf %174, %177 : vector<8x8xf32>
    %179 = math.exp %178 : vector<8x8xf32>
    %cst_56 = arith.constant dense<0.000000e+00> : vector<8xf32>
    %180 = vector.multi_reduction <add>, %179, %cst_56 [1] : vector<8x8xf32> to vector<8xf32>
    %181 = vector.shape_cast %180 : vector<8xf32> to vector<8x1xf32>
    %182 = tpu.reciprocal %181 {approx = true} : vector<8x1xf32> -> vector<8x1xf32>
    %183 = vector.broadcast %182 : vector<8x1xf32> to vector<8x8xf32>
    %184 = arith.mulf %179, %183 : vector<8x8xf32>
    %185 = arith.truncf %184 : vector<8x8xf32> to vector<8x8xbf16>
    %186 = vector.extract_strided_slice %116 {offsets = [0, 24], sizes = [8, 8], strides = [1, 1]} : vector<8x32xbf16> to vector<8x8xbf16>
    %cst_57 = arith.constant dense<0.000000e+00> : vector<8x8xf32>
    %187 = tpu.matmul %185, %186, %cst_57 {dimension_numbers = #tpu.dot_dimension_numbers<[1], [0], [0], [1], [0, 0, 1, 1], [], []>} : vector<8x8xbf16>, vector<8x8xbf16>, vector<8x8xf32> -> vector<8x8xf32>
    %188 = arith.truncf %187 : vector<8x8xf32> to vector<8x8xbf16>
    %c8_58 = arith.constant 8 : index
    %c24_59 = arith.constant 24 : index
    %189 = vector.load %arg15[%c8_58, %c24_59] : memref<16x32xbf16, #tpu.memory_space<vmem>>, vector<8x8xbf16>
    tpu.vector_store %arg15[%c8_58, %c24_59], %188 {strides = array<i32>} : memref<16x32xbf16, #tpu.memory_space<vmem>>, vector<8x8xbf16>,
    %c0_60 = arith.constant 0 : index
    %c0_61 = arith.constant 0 : index
    %190 = vector.load %arg15[%c0_60, %c0_61] : memref<16x32xbf16, #tpu.memory_space<vmem>>, vector<16x32xbf16>
    %c0_62 = arith.constant 0 : index
    %c0_63 = arith.constant 0 : index
    %191 = vector.load %arg6[%c0_62, %c0_63] : memref<32x32xbf16, #tpu.memory_space<vmem>>, vector<32x32xbf16>
    %cst_64 = arith.constant dense<0.000000e+00> : vector<16x32xf32>
    %192 = tpu.matmul %190, %191, %cst_64 {dimension_numbers = #tpu.dot_dimension_numbers<[1], [0], [0], [1], [0, 0, 1, 1], [], []>} : vector<16x32xbf16>, vector<32x32xbf16>, vector<16x32xf32> -> vector<16x32xf32>
    %c0_65 = arith.constant 0 : index
    %c0_66 = arith.constant 0 : index
    %193 = vector.load %arg7[%c0_65, %c0_66] : memref<1x32xf32, #tpu.memory_space<vmem>>, vector<1x32xf32>
    %194 = vector.broadcast %193 : vector<1x32xf32> to vector<16x32xf32>
    %195 = arith.addf %192, %194 : vector<16x32xf32>
    %196 = arith.addf %1, %195 : vector<16x32xf32>
    %c0_67 = arith.constant 0 : index
    %c0_68 = arith.constant 0 : index
    %197 = vector.load %arg8[%c0_67, %c0_68] : memref<1x32xf32, #tpu.memory_space<vmem>>, vector<1x32xf32>
    %c0_69 = arith.constant 0 : index
    %c0_70 = arith.constant 0 : index
    %198 = vector.load %arg9[%c0_69, %c0_70] : memref<1x32xf32, #tpu.memory_space<vmem>>, vector<1x32xf32>
    %cst_71 = arith.constant dense<0.000000e+00> : vector<16xf32>
    %199 = vector.multi_reduction <add>, %196, %cst_71 [1] : vector<16x32xf32> to vector<16xf32>
    %200 = vector.shape_cast %199 : vector<16xf32> to vector<16x1xf32>
    %cst_72 = arith.constant 3.200000e+01 : f32
    %201 = vector.broadcast %cst_72 : f32 to vector<16x1xf32>
    %202 = arith.divf %200, %201 : vector<16x1xf32>
    %203 = vector.broadcast %202 : vector<16x1xf32> to vector<16x32xf32>
    %204 = arith.subf %196, %203 : vector<16x32xf32>
    %205 = arith.mulf %204, %204 : vector<16x32xf32>
    %cst_73 = arith.constant dense<0.000000e+00> : vector<16xf32>
    %206 = vector.multi_reduction <add>, %205, %cst_73 [1] : vector<16x32xf32> to vector<16xf32>
    %207 = vector.shape_cast %206 : vector<16xf32> to vector<16x1xf32>
    %cst_74 = arith.constant 3.200000e+01 : f32
    %208 = vector.broadcast %cst_74 : f32 to vector<16x1xf32>
    %209 = arith.divf %207, %208 : vector<16x1xf32>
    %210 = vector.broadcast %202 : vector<16x1xf32> to vector<16x32xf32>
    %211 = arith.subf %196, %210 : vector<16x32xf32>
    %cst_75 = arith.constant 9.99999974E-6 : f32
    %212 = vector.broadcast %cst_75 : f32 to vector<16x1xf32>
    %213 = arith.addf %209, %212 : vector<16x1xf32>
    %214 = math.rsqrt %213 : vector<16x1xf32>
    %215 = vector.broadcast %214 : vector<16x1xf32> to vector<16x32xf32>
    %216 = arith.mulf %211, %215 : vector<16x32xf32>
    %217 = vector.broadcast %197 : vector<1x32xf32> to vector<16x32xf32>
    %218 = arith.mulf %216, %217 : vector<16x32xf32>
    %219 = vector.broadcast %198 : vector<1x32xf32> to vector<16x32xf32>
    %220 = arith.addf %218, %219 : vector<16x32xf32>
    %221 = arith.truncf %220 : vector<16x32xf32> to vector<16x32xbf16>
    %c0_76 = arith.constant 0 : index
    %c0_77 = arith.constant 0 : index
    %222 = vector.load %arg10[%c0_76, %c0_77] : memref<32x128xbf16, #tpu.memory_space<vmem>>, vector<32x128xbf16>
    %cst_78 = arith.constant dense<0.000000e+00> : vector<16x128xf32>
    %223 = tpu.matmul %221, %222, %cst_78 {dimension_numbers = #tpu.dot_dimension_numbers<[1], [0], [0], [1], [0, 0, 1, 1], [], []>} : vector<16x32xbf16>, vector<32x128xbf16>, vector<16x128xf32> -> vector<16x128xf32>
    %c0_79 = arith.constant 0 : index
    %c0_80 = arith.constant 0 : index
    %224 = vector.load %arg11[%c0_79, %c0_80] : memref<1x128xf32, #tpu.memory_space<vmem>>, vector<1x128xf32>
    %225 = vector.broadcast %224 : vector<1x128xf32> to vector<16x128xf32>
    %226 = arith.addf %223, %225 : vector<16x128xf32>
    %cst_81 = arith.constant 1.702000e+00 : f32
    %227 = vector.broadcast %cst_81 : f32 to vector<16x128xf32>
    %228 = arith.mulf %227, %226 : vector<16x128xf32>
    %229 = arith.negf %228 : vector<16x128xf32>
    %230 = math.exp %229 : vector<16x128xf32>
    %cst_82 = arith.constant 1.000000e+00 : f32
    %231 = vector.broadcast %cst_82 : f32 to vector<16x128xf32>
    %232 = arith.addf %231, %230 : vector<16x128xf32>
    %233 = arith.divf %231, %232 : vector<16x128xf32>
    %234 = arith.mulf %226, %233 : vector<16x128xf32>
    %235 = arith.truncf %234 : vector<16x128xf32> to vector<16x128xbf16>
    %c0_83 = arith.constant 0 : index
    %c0_84 = arith.constant 0 : index
    %236 = vector.load %arg12[%c0_83, %c0_84] : memref<128x32xbf16, #tpu.memory_space<vmem>>, vector<128x32xbf16>
    %cst_85 = arith.constant dense<0.000000e+00> : vector<16x32xf32>
    %237 = tpu.matmul %235, %236, %cst_85 {dimension_numbers = #tpu.dot_dimension_numbers<[1], [0], [0], [1], [0, 0, 1, 1], [], []>} : vector<16x128xbf16>, vector<128x32xbf16>, vector<16x32xf32> -> vector<16x32xf32>
    %c0_86 = arith.constant 0 : index
    %c0_87 = arith.constant 0 : index
    %238 = vector.load %arg13[%c0_86, %c0_87] : memref<1x32xf32, #tpu.memory_space<vmem>>, vector<1x32xf32>
    %239 = vector.broadcast %238 : vector<1x32xf32> to vector<16x32xf32>
    %240 = arith.addf %237, %239 : vector<16x32xf32>
    %241 = arith.addf %196, %240 : vector<16x32xf32>
    %242 = vector.shape_cast %241 : vector<16x32xf32> to vector<2x8x32xf32>
    %c0_88 = arith.constant 0 : index
    %c0_89 = arith.constant 0 : index
    %c0_90 = arith.constant 0 : index
    %243 = vector.load %arg14[%c0_88, %c0_89, %c0_90] : memref<2x8x32xf32, #tpu.memory_space<vmem>>, vector<2x8x32xf32>
    tpu.vector_store %arg14[%c0_88, %c0_89, %c0_90], %242 {strides = array<i32>} : memref<2x8x32xf32, #tpu.memory_space<vmem>>, vector<2x8x32xf32>,
    return
  }
  func.func @transform_0(%arg0: i32) -> (i32, i32, i32) {
    %c0_i32 = arith.constant 0 : i32
    %c0_i32_0 = arith.constant 0 : i32
    %c0_i32_1 = arith.constant 0 : i32
    return %arg0, %c0_i32, %c0_i32_0 : i32, i32, i32
  }
  func.func @transform_1(%arg0: i32) -> (i32, i32) {
    %c0_i32 = arith.constant 0 : i32
    %c0_i32_0 = arith.constant 0 : i32
    %c0_i32_1 = arith.constant 0 : i32
    return %c0_i32, %c0_i32_0 : i32, i32
  }
  func.func @transform_2(%arg0: i32) -> (i32, i32) {
    %c0_i32 = arith.constant 0 : i32
    %c0_i32_0 = arith.constant 0 : i32
    %c0_i32_1 = arith.constant 0 : i32
    return %c0_i32, %c0_i32_0 : i32, i32
  }
  func.func @transform_3(%arg0: i32) -> (i32, i32) {
    %c0_i32 = arith.constant 0 : i32
    %c0_i32_0 = arith.constant 0 : i32
    %c0_i32_1 = arith.constant 0 : i32
    return %c0_i32, %c0_i32_0 : i32, i32
  }
  func.func @transform_4(%arg0: i32) -> (i32, i32) {
    %c0_i32 = arith.constant 0 : i32
    %c0_i32_0 = arith.constant 0 : i32
    %c0_i32_1 = arith.constant 0 : i32
    return %c0_i32, %c0_i32_0 : i32, i32
  }
  func.func @transform_5(%arg0: i32) -> (i32, i32) {
    %c0_i32 = arith.constant 0 : i32
    %c0_i32_0 = arith.constant 0 : i32
    %c0_i32_1 = arith.constant 0 : i32
    return %c0_i32, %c0_i32_0 : i32, i32
  }
  func.func @transform_6(%arg0: i32) -> (i32, i32) {
    %c0_i32 = arith.constant 0 : i32
    %c0_i32_0 = arith.constant 0 : i32
    %c0_i32_1 = arith.constant 0 : i32
    return %c0_i32, %c0_i32_0 : i32, i32
  }
  func.func @transform_7(%arg0: i32) -> (i32, i32) {
    %c0_i32 = arith.constant 0 : i32
    %c0_i32_0 = arith.constant 0 : i32
    %c0_i32_1 = arith.constant 0 : i32
    return %c0_i32, %c0_i32_0 : i32, i32
  }
  func.func @transform_8(%arg0: i32) -> (i32, i32) {
    %c0_i32 = arith.constant 0 : i32
    %c0_i32_0 = arith.constant 0 : i32
    %c0_i32_1 = arith.constant 0 : i32
    return %c0_i32, %c0_i32_0 : i32, i32
  }
  func.func @transform_9(%arg0: i32) -> (i32, i32) {
    %c0_i32 = arith.constant 0 : i32
    %c0_i32_0 = arith.constant 0 : i32
    %c0_i32_1 = arith.constant 0 : i32
    return %c0_i32, %c0_i32_0 : i32, i32
  }
  func.func @transform_10(%arg0: i32) -> (i32, i32) {
    %c0_i32 = arith.constant 0 : i32
    %c0_i32_0 = arith.constant 0 : i32
    %c0_i32_1 = arith.constant 0 : i32
    return %c0_i32, %c0_i32_0 : i32, i32
  }
  func.func @transform_11(%arg0: i32) -> (i32, i32) {
    %c0_i32 = arith.constant 0 : i32
    %c0_i32_0 = arith.constant 0 : i32
    %c0_i32_1 = arith.constant 0 : i32
    return %c0_i32, %c0_i32_0 : i32, i32
  }
  func.func @transform_12(%arg0: i32) -> (i32, i32) {
    %c0_i32 = arith.constant 0 : i32
    %c0_i32_0 = arith.constant 0 : i32
    %c0_i32_1 = arith.constant 0 : i32
    return %c0_i32, %c0_i32_0 : i32, i32
  }
  func.func @transform_13(%arg0: i32) -> (i32, i32, i32) {
    %c0_i32 = arith.constant 0 : i32
    %c0_i32_0 = arith.constant 0 : i32
    %c0_i32_1 = arith.constant 0 : i32
    return %arg0, %c0_i32, %c0_i32_0 : i32, i32, i32
  }
}

</mosaic_0001>

<llo_original>
// kernel: tpu_custom_call.1
$region0: #{tpu_custom_call.1}
  #allocation0 [shape = 'u32[]', space=smem, size = 0x4, offset = 0x4, fixed_abs, tag = 'smem constant byte address 0x4 - core index']
  #allocation1 [shape = 'u32[144,128]{1,0:T(1,128)}', space=vmem, size = 0x12000, scoped, tag = 'internal scratch']
  #allocation2 [shape = 'bf16[16,32]{1,0:T(16,128)(2,1)}', space=vmem, size = 0x1000, scoped, tag = 'scratch operand']
  %s0 = inlined_call_operand.vmem [shape: f32[2,8,32], index: 0, kind: input, shape index: {}]
  %s1 = inlined_call_operand.vmem [shape: f32[1,32], index: 1, kind: input, shape index: {}]
  %s2 = inlined_call_operand.vmem [shape: f32[1,32], index: 2, kind: input, shape index: {}]
  %s3 = inlined_call_operand.vmem [shape: bf16[32,96], index: 3, kind: input, shape index: {}]
  %s4 = inlined_call_operand.vmem [shape: f32[1,96], index: 4, kind: input, shape index: {}]
  %s5 = inlined_call_operand.vmem [shape: bf16[32,32], index: 5, kind: input, shape index: {}]
  %s6 = inlined_call_operand.vmem [shape: f32[1,32], index: 6, kind: input, shape index: {}]
  %s7 = inlined_call_operand.vmem [shape: f32[1,32], index: 7, kind: input, shape index: {}]
  %s8 = inlined_call_operand.vmem [shape: f32[1,32], index: 8, kind: input, shape index: {}]
  %s9 = inlined_call_operand.vmem [shape: bf16[32,128], index: 9, kind: input, shape index: {}]
  %s10 = inlined_call_operand.vmem [shape: f32[1,128], index: 10, kind: input, shape index: {}]
  %s11 = inlined_call_operand.vmem [shape: bf16[128,32], index: 11, kind: input, shape index: {}]
  %s12 = inlined_call_operand.vmem [shape: f32[1,32], index: 12, kind: input, shape index: {}]
  %s13 = inlined_call_operand.hbm [shape: f32[2,8,32], index: 13, kind: output, shape index: {}]
  %s14 = sld [smem:[#allocation0]]
  $region62: #{tpu_custom_call.1} parent=0
    _
  %s16 = ssub.s32 1, %s14
  %s17 = scalar_select 0, %s16, %s14
  $region1: #{tpu_custom_call.1} parent=0
    #allocation3 [shape = 'u8[8192]{0}', space=vmem, size = 0x2000, scoped, tag = 'output window, operand 0, single buffered']
    #allocation4 [shape = 's32[1]{0}', space=sflag, size = 0x4, scoped, tag = 'scoped memory for tpu_custom_call.1']
    %18 = vsyncpa [#allocation4], 0
    // Predicated region
    $region2: #{tpu_custom_call.1} parent=1 // pred_check
      _
    $region3: #{tpu_custom_call.1} parent=1 // pred_check_branch
      %20 = sbr.rel (0) target = $region5
    $region4: #{tpu_custom_call.1} parent=1 // pred_region
      _
    $region5: #{tpu_custom_call.1} parent=1 // pred_fallthru
      _
    // Predicated region
    $region6: #{tpu_custom_call.1} parent=1 // pred_check
      _
    $region7: #{tpu_custom_call.1} parent=1 // pred_check_branch
      %22 = sbr.rel (0) target = $region9
    $region8: #{tpu_custom_call.1} parent=1 // pred_region
      _
    $region9: #{tpu_custom_call.1} parent=1 // pred_fallthru
      _
    // Predicated region
    $region10: #{tpu_custom_call.1} parent=1 // pred_check
      _
    $region11: #{tpu_custom_call.1} parent=1 // pred_check_branch
      %24 = sbr.rel (0) target = $region13
    $region12: #{tpu_custom_call.1} parent=1 // pred_region
      _
    $region13: #{tpu_custom_call.1} parent=1 // pred_fallthru
      _
    // Predicated region
    $region14: #{tpu_custom_call.1} parent=1 // pred_check
      _
    $region15: #{tpu_custom_call.1} parent=1 // pred_check_branch
      %26 = sbr.rel (0) target = $region17
    $region16: #{tpu_custom_call.1} parent=1 // pred_region
      _
    $region17: #{tpu_custom_call.1} parent=1 // pred_fallthru
      _
    // Predicated region
    $region18: #{tpu_custom_call.1} parent=1 // pred_check
      _
    $region19: #{tpu_custom_call.1} parent=1 // pred_check_branch
      %28 = sbr.rel (0) target = $region21
    $region20: #{tpu_custom_call.1} parent=1 // pred_region
      _
    $region21: #{tpu_custom_call.1} parent=1 // pred_fallthru
      _
    // Predicated region
    $region22: #{tpu_custom_call.1} parent=1 // pred_check
      _
    $region23: #{tpu_custom_call.1} parent=1 // pred_check_branch
      %30 = sbr.rel (0) target = $region25
    $region24: #{tpu_custom_call.1} parent=1 // pred_region
      _
    $region25: #{tpu_custom_call.1} parent=1 // pred_fallthru
      _
    // Predicated region
    $region26: #{tpu_custom_call.1} parent=1 // pred_check
      _
    $region27: #{tpu_custom_call.1} parent=1 // pred_check_branch
      %32 = sbr.rel (0) target = $region29
    $region28: #{tpu_custom_call.1} parent=1 // pred_region
      _
    $region29: #{tpu_custom_call.1} parent=1 // pred_fallthru
      _
    // Predicated region
    $region30: #{tpu_custom_call.1} parent=1 // pred_check
      _
    $region31: #{tpu_custom_call.1} parent=1 // pred_check_branch
      %34 = sbr.rel (0) target = $region33
    $region32: #{tpu_custom_call.1} parent=1 // pred_region
      _
    $region33: #{tpu_custom_call.1} parent=1 // pred_fallthru
      _
    // Predicated region
    $region34: #{tpu_custom_call.1} parent=1 // pred_check
      _
    $region35: #{tpu_custom_call.1} parent=1 // pred_check_branch
      %36 = sbr.rel (0) target = $region37
    $region36: #{tpu_custom_call.1} parent=1 // pred_region
      _
    $region37: #{tpu_custom_call.1} parent=1 // pred_fallthru
      _
    // Predicated region
    $region38: #{tpu_custom_call.1} parent=1 // pred_check
      _
    $region39: #{tpu_custom_call.1} parent=1 // pred_check_branch
      %38 = sbr.rel (0) target = $region41
    $region40: #{tpu_custom_call.1} parent=1 // pred_region
      _
    $region41: #{tpu_custom_call.1} parent=1 // pred_fallthru
      _
    // Predicated region
    $region42: #{tpu_custom_call.1} parent=1 // pred_check
      _
    $region43: #{tpu_custom_call.1} parent=1 // pred_check_branch
      %40 = sbr.rel (0) target = $region45
    $region44: #{tpu_custom_call.1} parent=1 // pred_region
      _
    $region45: #{tpu_custom_call.1} parent=1 // pred_fallthru
      _
    // Predicated region
    $region46: #{tpu_custom_call.1} parent=1 // pred_check
      _
    $region47: #{tpu_custom_call.1} parent=1 // pred_check_branch
      %42 = sbr.rel (0) target = $region49
    $region48: #{tpu_custom_call.1} parent=1 // pred_region
      _
    $region49: #{tpu_custom_call.1} parent=1 // pred_fallthru
      _
    // Predicated region
    $region50: #{tpu_custom_call.1} parent=1 // pred_check
      _
    $region51: #{tpu_custom_call.1} parent=1 // pred_check_branch
      %44 = sbr.rel (0) target = $region53
    $region52: #{tpu_custom_call.1} parent=1 // pred_region
      _
    $region53: #{tpu_custom_call.1} parent=1 // pred_fallthru
      _
    %v46 = vld [vmem:[%s0] sm:$0xff]
    %v47 = vld [vmem:[%s0 + $0x8] sm:$0xff]
    %v48 = vld [vmem:[%s1] sm:$0x1]
    %v49 = vld [vmem:[%s2] sm:$0x1]
    %vm50 = vcmask 261120
    %v51 = vsel %vm50, %v46, 0.0
    %52 = vadd.xlane.f32.xlu0 %v51
    %v53 = vpop.xlane.xlu0 %52
    %v54 = vsel %vm50, %v47, 0.0
    %55 = vadd.xlane.f32.xlu0 %v54
    %v56 = vpop.xlane.xlu0 %55
    %v57 = vrcp.pop 32.0
    %v58 = vmul.f32 %v53, %v57
    %v59 = vmul.f32 %v56, %v57
    %v60 = vsub.f32 %v46, %v58
    %v61 = vsub.f32 %v47, %v59
    %v62 = vmul.f32 %v60, %v60
    %v63 = vmul.f32 %v61, %v61
    %v64 = vsel %vm50, %v62, 0.0
    %65 = vadd.xlane.f32.xlu0 %v64
    %v66 = vpop.xlane.xlu0 %65
    %v67 = vsel %vm50, %v63, 0.0
    %68 = vadd.xlane.f32.xlu0 %v67
    %v69 = vpop.xlane.xlu0 %68
    %v70 = vmul.f32 %v66, %v57
    %v71 = vmul.f32 %v69, %v57
    %v72 = vadd.f32 %v70, 1e-05
    %v73 = vadd.f32 %v71, 1e-05
    %v74 = vrsqrt.pop %v72
    %v75 = vrsqrt.pop %v73
    %v76 = vmul.f32 %v60, %v74
    %v77 = vmul.f32 %v61, %v75
    %v79 = vlaneseq
    %v80 = vshrl.u32 %v79, 7
    %v81 = vsub.s32 0, %v80
    %v82 = vrot.slane %v48, %v81
    %v84 = vmul.f32 %v76, %v82
    %v85 = vmul.f32 %v77, %v82
    %v87 = vlaneseq
    %v88 = vshrl.u32 %v87, 7
    %v89 = vsub.s32 0, %v88
    %v90 = vrot.slane %v49, %v89
    %v92 = vadd.f32 %v84, %v90
    %v93 = vadd.f32 %v85, %v90
    %v94 = vpack.c.bf16 %v93, %v92
    %v95 = vld [vmem:[%s3] sm:$0xf]
    %v96 = vld [vmem:[%s3 + $0x4] sm:$0xf]
    %v97 = vld [vmem:[%s3 + $0x8] sm:$0xf]
    %v98 = vld [vmem:[%s3 + $0xc] sm:$0xf]
    %v99 = vld [vmem:[%s4] sm:$0x1]
    %v101 = vlaneseq
    %v102 = vshrl.u32 %v101, 7
    %v103 = vsub.s32 0, %v102
    %v104 = vrot.slane %v99, %v103
    %v110 = vunpack.c.l.b16 %v95
    %v111 = vunpack.c.l.b16 %v96
    %v112 = vunpack.c.l.b16 %v97
    %v113 = vunpack.c.l.b16 %v98
    %v114 = vpack.c.b16 %v111, %v110
    %v115 = vpack.c.b16 %v113, %v112
    %v119 = vsel %vm50, %v94, 0
    %121 = vmatprep.subr.bf16.mxu0 0
    %122 = vmatpush1.bf16.msra.mxu0 %v114
    %123 = vmatprep.subr.bf16.mxu0 0
    %124 = vmatpush1.bf16.msra.mxu0 %v115
    %125 = vmatprep.subr.bf16.mxu0 0
    %126 = vmatpush1.bf16.msra.mxu0 0
    %127 = vmatprep.subr.bf16.mxu0 0
    %128 = vmatpush1.bf16.msra.mxu0 0
    %129 = vmatprep.subr.bf16.mxu0 0
    %130 = vmatpush1.bf16.msra.mxu0 0
    %131 = vmatprep.subr.bf16.mxu0 0
    %132 = vmatpush1.bf16.msra.mxu0 0
    %133 = vmatprep.subr.bf16.mxu0 0
    %134 = vmatpush1.bf16.msra.mxu0 0
    %135 = vmatprep.subr.bf16.mxu0 0
    %136 = vmatpush1.bf16.msra.mxu0 0
    %137 = vmatprep.subr.bf16.mxu0 0
    %138 = vmatpush1.bf16.msra.mxu0 0
    %139 = vmatprep.subr.bf16.mxu0 0
    %140 = vmatpush1.bf16.msra.mxu0 0
    %141 = vmatprep.subr.bf16.mxu0 0
    %142 = vmatpush1.bf16.msra.mxu0 0
    %143 = vmatprep.subr.bf16.mxu0 0
    %144 = vmatpush1.bf16.msra.mxu0 0
    %145 = vmatprep.subr.bf16.mxu0 0
    %146 = vmatpush1.bf16.msra.mxu0 0
    %147 = vmatprep.subr.bf16.mxu0 0
    %148 = vmatpush1.bf16.msra.mxu0 0
    %149 = vmatprep.subr.bf16.mxu0 0
    %150 = vmatpush1.bf16.msra.mxu0 0
    %151 = vmatprep.subr.bf16.mxu0 0
    %152 = vmatpush1.bf16.msra.mxu0 0
    %153 = vmatprep.mubr.bf16.mxu0 0
    %154 = vmatmul.mubr.bf16.gmra.mrb[0].mxu0 %v119
    %v155 = vpop.f32.mrb[0].mxu0
    %v156 = vadd.f32 %v104, %v155
    %v157 = vpop.f32.mrb[0].mxu0
    %v158 = vpop.f32.mrb[0].mxu0
    %v159 = vadd.f32 %v104, %v158
    %v160 = vpop.f32.mrb[0].mxu0
    %161 = vdwg.mxu0
    %v162 = vpack.c.bf16 %v159, %v156
    %164 = vrot.lane.b32.xlu0 %v162, 96
    %v165 = vpop.permute.xlu0 %164
    %vm166 = vcmask 64512
    %v168 = vsel %vm166, %v162, 0
    %v171 = vsel %vm166, %v165, 0
    %173 = vmatprep.subr.bf16.mxu0 0
    %174 = vmatpush1.bf16.xpose.msra.mxu0 %v171
    %175 = vmatprep.subr.bf16.mxu0 0
    %176 = vmatpush1.bf16.xpose.msra.mxu0 0
    %177 = vmatprep.subr.bf16.mxu0 0
    %178 = vmatpush1.bf16.xpose.msra.mxu0 0
    %179 = vmatprep.subr.bf16.mxu0 0
    %180 = vmatpush1.bf16.xpose.msra.mxu0 0
    %181 = vmatprep.subr.bf16.mxu0 0
    %182 = vmatpush1.bf16.xpose.msra.mxu0 0
    %183 = vmatprep.subr.bf16.mxu0 0
    %184 = vmatpush1.bf16.xpose.msra.mxu0 0
    %185 = vmatprep.subr.bf16.mxu0 0
    %186 = vmatpush1.bf16.xpose.msra.mxu0 0
    %187 = vmatprep.subr.bf16.mxu0 0
    %188 = vmatpush1.bf16.xpose.msra.mxu0 0
    %189 = vmatprep.subr.bf16.mxu0 0
    %190 = vmatpush1.bf16.xpose.msra.mxu0 0
    %191 = vmatprep.subr.bf16.mxu0 0
    %192 = vmatpush1.bf16.xpose.msra.mxu0 0
    %193 = vmatprep.subr.bf16.mxu0 0
    %194 = vmatpush1.bf16.xpose.msra.mxu0 0
    %195 = vmatprep.subr.bf16.mxu0 0
    %196 = vmatpush1.bf16.xpose.msra.mxu0 0
    %197 = vmatprep.subr.bf16.mxu0 0
    %198 = vmatpush1.bf16.xpose.msra.mxu0 0
    %199 = vmatprep.subr.bf16.mxu0 0
    %200 = vmatpush1.bf16.xpose.msra.mxu0 0
    %201 = vmatprep.subr.bf16.mxu0 0
    %202 = vmatpush1.bf16.xpose.msra.mxu0 0
    %203 = vmatprep.subr.bf16.mxu0 0
    %204 = vmatpush1.bf16.xpose.msra.mxu0 0
    %205 = vmatprep.mubr.bf16.mxu0 0
    %206 = vmatmul.mubr.bf16.gmra.mrb[0].mxu0 %v168
    %v207 = vpop.f32.mrb[0].mxu0
    %v208 = vadd.f32 0.0, %v207
    %v209 = vpop.f32.mrb[0].mxu0
    %v210 = vpop.f32.mrb[0].mxu0
    %v211 = vpop.f32.mrb[0].mxu0
    %212 = vdwg.mxu0
    %v213 = vsel %vm166, %v208, -inf
    %214 = vmax.xlane.f32.xlu0 %v213
    %v215 = vpop.xlane.xlu0 %214
    %v216 = vsub.f32 %v208, %v215
    %v217 = vmul.f32 %v216, 1.442695
    %v218 = vpow.pop %v217
    %v219 = vsel %vm166, %v218, 0.0
    %220 = vadd.xlane.f32.xlu0 %v219
    %v221 = vpop.xlane.xlu0 %220
    %v222 = vrcp.pop %v221
    %v223 = vmul.f32 %v218, %v222
    %v224 = vpack.c.bf16 %v223, %v223
    %225 = vrot.lane.b32.xlu0 %v162, 64
    %v226 = vpop.permute.xlu0 %225
    %v228 = vsel %vm166, %v224, 0
    %vm230 = vcmask 1043456
    %v232 = vsel %vm230, %v226, 0
    %234 = vmatprep.subr.bf16.mxu0 0
    %235 = vmatpush1.bf16.msra.mxu0 %v232
    %236 = vmatprep.subr.bf16.mxu0 0
    %237 = vmatpush1.bf16.msra.mxu0 0
    %238 = vmatprep.subr.bf16.mxu0 0
    %239 = vmatpush1.bf16.msra.mxu0 0
    %240 = vmatprep.subr.bf16.mxu0 0
    %241 = vmatpush1.bf16.msra.mxu0 0
    %242 = vmatprep.subr.bf16.mxu0 0
    %243 = vmatpush1.bf16.msra.mxu0 0
    %244 = vmatprep.subr.bf16.mxu0 0
    %245 = vmatpush1.bf16.msra.mxu0 0
    %246 = vmatprep.subr.bf16.mxu0 0
    %247 = vmatpush1.bf16.msra.mxu0 0
    %248 = vmatprep.subr.bf16.mxu0 0
    %249 = vmatpush1.bf16.msra.mxu0 0
    %250 = vmatprep.subr.bf16.mxu0 0
    %251 = vmatpush1.bf16.msra.mxu0 0
    %252 = vmatprep.subr.bf16.mxu0 0
    %253 = vmatpush1.bf16.msra.mxu0 0
    %254 = vmatprep.subr.bf16.mxu0 0
    %255 = vmatpush1.bf16.msra.mxu0 0
    %256 = vmatprep.subr.bf16.mxu0 0
    %257 = vmatpush1.bf16.msra.mxu0 0
    %258 = vmatprep.subr.bf16.mxu0 0
    %259 = vmatpush1.bf16.msra.mxu0 0
    %260 = vmatprep.subr.bf16.mxu0 0
    %261 = vmatpush1.bf16.msra.mxu0 0
    %262 = vmatprep.subr.bf16.mxu0 0
    %263 = vmatpush1.bf16.msra.mxu0 0
    %264 = vmatprep.subr.bf16.mxu0 0
    %265 = vmatpush1.bf16.msra.mxu0 0
    %266 = vmatprep.mubr.bf16.mxu0 0
    %267 = vmatmul.mubr.bf16.gmra.mrb[0].mxu0 %v228
    %v268 = vpop.f32.mrb[0].mxu0
    %v269 = vadd.f32 0.0, %v268
    %v270 = vpop.f32.mrb[0].mxu0
    %v271 = vpop.f32.mrb[0].mxu0
    %v272 = vpop.f32.mrb[0].mxu0
    %273 = vdwg.mxu0
    %v274 = vpack.c.bf16 %v269, %v269
    %vm275 = vcmask 60416
    %276 = vst.msk [vmem:[#allocation2] sm:$0xf] %vm275, %v274
    %277 = vrot.lane.b32.xlu0 %v162, 120
    %v278 = vpop.permute.xlu0 %277
    %279 = vrot.lane.b32.xlu0 %v162, 88
    %v280 = vpop.permute.xlu0 %279
    %v282 = vsel %vm166, %v278, 0
    %v285 = vsel %vm166, %v280, 0
    %287 = vmatprep.subr.bf16.mxu0 0
    %288 = vmatpush1.bf16.xpose.msra.mxu0 %v285
    %289 = vmatprep.subr.bf16.mxu0 0
    %290 = vmatpush1.bf16.xpose.msra.mxu0 0
    %291 = vmatprep.subr.bf16.mxu0 0
    %292 = vmatpush1.bf16.xpose.msra.mxu0 0
    %293 = vmatprep.subr.bf16.mxu0 0
    %294 = vmatpush1.bf16.xpose.msra.mxu0 0
    %295 = vmatprep.subr.bf16.mxu0 0
    %296 = vmatpush1.bf16.xpose.msra.mxu0 0
    %297 = vmatprep.subr.bf16.mxu0 0
    %298 = vmatpush1.bf16.xpose.msra.mxu0 0
    %299 = vmatprep.subr.bf16.mxu0 0
    %300 = vmatpush1.bf16.xpose.msra.mxu0 0
    %301 = vmatprep.subr.bf16.mxu0 0
    %302 = vmatpush1.bf16.xpose.msra.mxu0 0
    %303 = vmatprep.subr.bf16.mxu0 0
    %304 = vmatpush1.bf16.xpose.msra.mxu0 0
    %305 = vmatprep.subr.bf16.mxu0 0
    %306 = vmatpush1.bf16.xpose.msra.mxu0 0
    %307 = vmatprep.subr.bf16.mxu0 0
    %308 = vmatpush1.bf16.xpose.msra.mxu0 0
    %309 = vmatprep.subr.bf16.mxu0 0
    %310 = vmatpush1.bf16.xpose.msra.mxu0 0
    %311 = vmatprep.subr.bf16.mxu0 0
    %312 = vmatpush1.bf16.xpose.msra.mxu0 0
    %313 = vmatprep.subr.bf16.mxu0 0
    %314 = vmatpush1.bf16.xpose.msra.mxu0 0
    %315 = vmatprep.subr.bf16.mxu0 0
    %316 = vmatpush1.bf16.xpose.msra.mxu0 0
    %317 = vmatprep.subr.bf16.mxu0 0
    %318 = vmatpush1.bf16.xpose.msra.mxu0 0
    %319 = vmatprep.mubr.bf16.mxu0 0
    %320 = vmatmul.mubr.bf16.gmra.mrb[0].mxu0 %v282
    %v321 = vpop.f32.mrb[0].mxu0
    %v322 = vadd.f32 0.0, %v321
    %v323 = vpop.f32.mrb[0].mxu0
    %v324 = vpop.f32.mrb[0].mxu0
    %v325 = vpop.f32.mrb[0].mxu0
    %326 = vdwg.mxu0
    %v327 = vsel %vm166, %v322, -inf
    %328 = vmax.xlane.f32.xlu0 %v327
    %v329 = vpop.xlane.xlu0 %328
    %v330 = vsub.f32 %v322, %v329
    %v331 = vmul.f32 %v330, 1.442695
    %v332 = vpow.pop %v331
    %v333 = vsel %vm166, %v332, 0.0
    %334 = vadd.xlane.f32.xlu0 %v333
    %v335 = vpop.xlane.xlu0 %334
    %v336 = vrcp.pop %v335
    %v337 = vmul.f32 %v332, %v336
    %v338 = vpack.c.bf16 %v337, %v337
    %339 = vrot.lane.b32.xlu0 %v162, 56
    %v340 = vpop.permute.xlu0 %339
    %v342 = vsel %vm166, %v338, 0
    %v345 = vsel %vm230, %v340, 0
    %347 = vmatprep.subr.bf16.mxu0 0
    %348 = vmatpush1.bf16.msra.mxu0 %v345
    %349 = vmatprep.subr.bf16.mxu0 0
    %350 = vmatpush1.bf16.msra.mxu0 0
    %351 = vmatprep.subr.bf16.mxu0 0
    %352 = vmatpush1.bf16.msra.mxu0 0
    %353 = vmatprep.subr.bf16.mxu0 0
    %354 = vmatpush1.bf16.msra.mxu0 0
    %355 = vmatprep.subr.bf16.mxu0 0
    %356 = vmatpush1.bf16.msra.mxu0 0
    %357 = vmatprep.subr.bf16.mxu0 0
    %358 = vmatpush1.bf16.msra.mxu0 0
    %359 = vmatprep.subr.bf16.mxu0 0
    %360 = vmatpush1.bf16.msra.mxu0 0
    %361 = vmatprep.subr.bf16.mxu0 0
    %362 = vmatpush1.bf16.msra.mxu0 0
    %363 = vmatprep.subr.bf16.mxu0 0
    %364 = vmatpush1.bf16.msra.mxu0 0
    %365 = vmatprep.subr.bf16.mxu0 0
    %366 = vmatpush1.bf16.msra.mxu0 0
    %367 = vmatprep.subr.bf16.mxu0 0
    %368 = vmatpush1.bf16.msra.mxu0 0
    %369 = vmatprep.subr.bf16.mxu0 0
    %370 = vmatpush1.bf16.msra.mxu0 0
    %371 = vmatprep.subr.bf16.mxu0 0
    %372 = vmatpush1.bf16.msra.mxu0 0
    %373 = vmatprep.subr.bf16.mxu0 0
    %374 = vmatpush1.bf16.msra.mxu0 0
    %375 = vmatprep.subr.bf16.mxu0 0
    %376 = vmatpush1.bf16.msra.mxu0 0
    %377 = vmatprep.subr.bf16.mxu0 0
    %378 = vmatpush1.bf16.msra.mxu0 0
    %379 = vmatprep.mubr.bf16.mxu0 0
    %380 = vmatmul.mubr.bf16.gmra.mrb[0].mxu0 %v342
    %v381 = vpop.f32.mrb[0].mxu0
    %v382 = vadd.f32 0.0, %v381
    %v383 = vpop.f32.mrb[0].mxu0
    %v384 = vpop.f32.mrb[0].mxu0
    %v385 = vpop.f32.mrb[0].mxu0
    %386 = vdwg.mxu0
    %v387 = vpack.c.bf16 %v382, %v382
    %389 = vrot.lane.b32.xlu0 %v387, 8
    %v390 = vpop.permute.xlu0 %389
    %vm392 = vcmask 126016
    %393 = vst.msk [vmem:[#allocation2] sm:$0xf] %vm392, %v390
    %394 = vrot.lane.b32.xlu0 %v162, 112
    %v395 = vpop.permute.xlu0 %394
    %396 = vrot.lane.b32.xlu0 %v162, 80
    %v397 = vpop.permute.xlu0 %396
    %v399 = vsel %vm166, %v395, 0
    %v402 = vsel %vm166, %v397, 0
    %404 = vmatprep.subr.bf16.mxu0 0
    %405 = vmatpush1.bf16.xpose.msra.mxu0 %v402
    %406 = vmatprep.subr.bf16.mxu0 0
    %407 = vmatpush1.bf16.xpose.msra.mxu0 0
    %408 = vmatprep.subr.bf16.mxu0 0
    %409 = vmatpush1.bf16.xpose.msra.mxu0 0
    %410 = vmatprep.subr.bf16.mxu0 0
    %411 = vmatpush1.bf16.xpose.msra.mxu0 0
    %412 = vmatprep.subr.bf16.mxu0 0
    %413 = vmatpush1.bf16.xpose.msra.mxu0 0
    %414 = vmatprep.subr.bf16.mxu0 0
    %415 = vmatpush1.bf16.xpose.msra.mxu0 0
    %416 = vmatprep.subr.bf16.mxu0 0
    %417 = vmatpush1.bf16.xpose.msra.mxu0 0
    %418 = vmatprep.subr.bf16.mxu0 0
    %419 = vmatpush1.bf16.xpose.msra.mxu0 0
    %420 = vmatprep.subr.bf16.mxu0 0
    %421 = vmatpush1.bf16.xpose.msra.mxu0 0
    %422 = vmatprep.subr.bf16.mxu0 0
    %423 = vmatpush1.bf16.xpose.msra.mxu0 0
    %424 = vmatprep.subr.bf16.mxu0 0
    %425 = vmatpush1.bf16.xpose.msra.mxu0 0
    %426 = vmatprep.subr.bf16.mxu0 0
    %427 = vmatpush1.bf16.xpose.msra.mxu0 0
    %428 = vmatprep.subr.bf16.mxu0 0
    %429 = vmatpush1.bf16.xpose.msra.mxu0 0
    %430 = vmatprep.subr.bf16.mxu0 0
    %431 = vmatpush1.bf16.xpose.msra.mxu0 0
    %432 = vmatprep.subr.bf16.mxu0 0
    %433 = vmatpush1.bf16.xpose.msra.mxu0 0
    %434 = vmatprep.subr.bf16.mxu0 0
    %435 = vmatpush1.bf16.xpose.msra.mxu0 0
    %436 = vmatprep.mubr.bf16.mxu0 0
    %437 = vmatmul.mubr.bf16.gmra.mrb[0].mxu0 %v399
    %v438 = vpop.f32.mrb[0].mxu0
    %v439 = vadd.f32 0.0, %v438
    %v440 = vpop.f32.mrb[0].mxu0
    %v441 = vpop.f32.mrb[0].mxu0
    %v442 = vpop.f32.mrb[0].mxu0
    %443 = vdwg.mxu0
    %v444 = vsel %vm166, %v439, -inf
    %445 = vmax.xlane.f32.xlu0 %v444
    %v446 = vpop.xlane.xlu0 %445
    %v447 = vsub.f32 %v439, %v446
    %v448 = vmul.f32 %v447, 1.442695
    %v449 = vpow.pop %v448
    %v450 = vsel %vm166, %v449, 0.0
    %451 = vadd.xlane.f32.xlu0 %v450
    %v452 = vpop.xlane.xlu0 %451
    %v453 = vrcp.pop %v452
    %v454 = vmul.f32 %v449, %v453
    %v455 = vpack.c.bf16 %v454, %v454
    %456 = vrot.lane.b32.xlu0 %v162, 48
    %v457 = vpop.permute.xlu0 %456
    %v459 = vsel %vm166, %v455, 0
    %v462 = vsel %vm230, %v457, 0
    %464 = vmatprep.subr.bf16.mxu0 0
    %465 = vmatpush1.bf16.msra.mxu0 %v462
    %466 = vmatprep.subr.bf16.mxu0 0
    %467 = vmatpush1.bf16.msra.mxu0 0
    %468 = vmatprep.subr.bf16.mxu0 0
    %469 = vmatpush1.bf16.msra.mxu0 0
    %470 = vmatprep.subr.bf16.mxu0 0
    %471 = vmatpush1.bf16.msra.mxu0 0
    %472 = vmatprep.subr.bf16.mxu0 0
    %473 = vmatpush1.bf16.msra.mxu0 0
    %474 = vmatprep.subr.bf16.mxu0 0
    %475 = vmatpush1.bf16.msra.mxu0 0
    %476 = vmatprep.subr.bf16.mxu0 0
    %477 = vmatpush1.bf16.msra.mxu0 0
    %478 = vmatprep.subr.bf16.mxu0 0
    %479 = vmatpush1.bf16.msra.mxu0 0
    %480 = vmatprep.subr.bf16.mxu0 0
    %481 = vmatpush1.bf16.msra.mxu0 0
    %482 = vmatprep.subr.bf16.mxu0 0
    %483 = vmatpush1.bf16.msra.mxu0 0
    %484 = vmatprep.subr.bf16.mxu0 0
    %485 = vmatpush1.bf16.msra.mxu0 0
    %486 = vmatprep.subr.bf16.mxu0 0
    %487 = vmatpush1.bf16.msra.mxu0 0
    %488 = vmatprep.subr.bf16.mxu0 0
    %489 = vmatpush1.bf16.msra.mxu0 0
    %490 = vmatprep.subr.bf16.mxu0 0
    %491 = vmatpush1.bf16.msra.mxu0 0
    %492 = vmatprep.subr.bf16.mxu0 0
    %493 = vmatpush1.bf16.msra.mxu0 0
    %494 = vmatprep.subr.bf16.mxu0 0
    %495 = vmatpush1.bf16.msra.mxu0 0
    %496 = vmatprep.mubr.bf16.mxu0 0
    %497 = vmatmul.mubr.bf16.gmra.mrb[0].mxu0 %v459
    %v498 = vpop.f32.mrb[0].mxu0
    %v499 = vadd.f32 0.0, %v498
    %v500 = vpop.f32.mrb[0].mxu0
    %v501 = vpop.f32.mrb[0].mxu0
    %v502 = vpop.f32.mrb[0].mxu0
    %503 = vdwg.mxu0
    %v504 = vpack.c.bf16 %v499, %v499
    %506 = vrot.lane.b32.xlu0 %v504, 16
    %v507 = vpop.permute.xlu0 %506
    %vm509 = vcmask 191616
    %510 = vst.msk [vmem:[#allocation2] sm:$0xf] %vm509, %v507
    %511 = vrot.lane.b32.xlu0 %v162, 104
    %v512 = vpop.permute.xlu0 %511
    %513 = vrot.lane.b32.xlu0 %v162, 72
    %v514 = vpop.permute.xlu0 %513
    %v516 = vsel %vm166, %v512, 0
    %v519 = vsel %vm166, %v514, 0
    %521 = vmatprep.subr.bf16.mxu0 0
    %522 = vmatpush1.bf16.xpose.msra.mxu0 %v519
    %523 = vmatprep.subr.bf16.mxu0 0
    %524 = vmatpush1.bf16.xpose.msra.mxu0 0
    %525 = vmatprep.subr.bf16.mxu0 0
    %526 = vmatpush1.bf16.xpose.msra.mxu0 0
    %527 = vmatprep.subr.bf16.mxu0 0
    %528 = vmatpush1.bf16.xpose.msra.mxu0 0
    %529 = vmatprep.subr.bf16.mxu0 0
    %530 = vmatpush1.bf16.xpose.msra.mxu0 0
    %531 = vmatprep.subr.bf16.mxu0 0
    %532 = vmatpush1.bf16.xpose.msra.mxu0 0
    %533 = vmatprep.subr.bf16.mxu0 0
    %534 = vmatpush1.bf16.xpose.msra.mxu0 0
    %535 = vmatprep.subr.bf16.mxu0 0
    %536 = vmatpush1.bf16.xpose.msra.mxu0 0
    %537 = vmatprep.subr.bf16.mxu0 0
    %538 = vmatpush1.bf16.xpose.msra.mxu0 0
    %539 = vmatprep.subr.bf16.mxu0 0
    %540 = vmatpush1.bf16.xpose.msra.mxu0 0
    %541 = vmatprep.subr.bf16.mxu0 0
    %542 = vmatpush1.bf16.xpose.msra.mxu0 0
    %543 = vmatprep.subr.bf16.mxu0 0
    %544 = vmatpush1.bf16.xpose.msra.mxu0 0
    %545 = vmatprep.subr.bf16.mxu0 0
    %546 = vmatpush1.bf16.xpose.msra.mxu0 0
    %547 = vmatprep.subr.bf16.mxu0 0
    %548 = vmatpush1.bf16.xpose.msra.mxu0 0
    %549 = vmatprep.subr.bf16.mxu0 0
    %550 = vmatpush1.bf16.xpose.msra.mxu0 0
    %551 = vmatprep.subr.bf16.mxu0 0
    %552 = vmatpush1.bf16.xpose.msra.mxu0 0
    %553 = vmatprep.mubr.bf16.mxu0 0
    %554 = vmatmul.mubr.bf16.gmra.mrb[0].mxu0 %v516
    %v555 = vpop.f32.mrb[0].mxu0
    %v556 = vadd.f32 0.0, %v555
    %v557 = vpop.f32.mrb[0].mxu0
    %v558 = vpop.f32.mrb[0].mxu0
    %v559 = vpop.f32.mrb[0].mxu0
    %560 = vdwg.mxu0
    %v561 = vsel %vm166, %v556, -inf
    %562 = vmax.xlane.f32.xlu0 %v561
    %v563 = vpop.xlane.xlu0 %562
    %v564 = vsub.f32 %v556, %v563
    %v565 = vmul.f32 %v564, 1.442695
    %v566 = vpow.pop %v565
    %v567 = vsel %vm166, %v566, 0.0
    %568 = vadd.xlane.f32.xlu0 %v567
    %v569 = vpop.xlane.xlu0 %568
    %v570 = vrcp.pop %v569
    %v571 = vmul.f32 %v566, %v570
    %v572 = vpack.c.bf16 %v571, %v571
    %573 = vrot.lane.b32.xlu0 %v162, 40
    %v574 = vpop.permute.xlu0 %573
    %v576 = vsel %vm166, %v572, 0
    %v579 = vsel %vm230, %v574, 0
    %581 = vmatprep.subr.bf16.mxu0 0
    %582 = vmatpush1.bf16.msra.mxu0 %v579
    %583 = vmatprep.subr.bf16.mxu0 0
    %584 = vmatpush1.bf16.msra.mxu0 0
    %585 = vmatprep.subr.bf16.mxu0 0
    %586 = vmatpush1.bf16.msra.mxu0 0
    %587 = vmatprep.subr.bf16.mxu0 0
    %588 = vmatpush1.bf16.msra.mxu0 0
    %589 = vmatprep.subr.bf16.mxu0 0
    %590 = vmatpush1.bf16.msra.mxu0 0
    %591 = vmatprep.subr.bf16.mxu0 0
    %592 = vmatpush1.bf16.msra.mxu0 0
    %593 = vmatprep.subr.bf16.mxu0 0
    %594 = vmatpush1.bf16.msra.mxu0 0
    %595 = vmatprep.subr.bf16.mxu0 0
    %596 = vmatpush1.bf16.msra.mxu0 0
    %597 = vmatprep.subr.bf16.mxu0 0
    %598 = vmatpush1.bf16.msra.mxu0 0
    %599 = vmatprep.subr.bf16.mxu0 0
    %600 = vmatpush1.bf16.msra.mxu0 0
    %601 = vmatprep.subr.bf16.mxu0 0
    %602 = vmatpush1.bf16.msra.mxu0 0
    %603 = vmatprep.subr.bf16.mxu0 0
    %604 = vmatpush1.bf16.msra.mxu0 0
    %605 = vmatprep.subr.bf16.mxu0 0
    %606 = vmatpush1.bf16.msra.mxu0 0
    %607 = vmatprep.subr.bf16.mxu0 0
    %608 = vmatpush1.bf16.msra.mxu0 0
    %609 = vmatprep.subr.bf16.mxu0 0
    %610 = vmatpush1.bf16.msra.mxu0 0
    %611 = vmatprep.subr.bf16.mxu0 0
    %612 = vmatpush1.bf16.msra.mxu0 0
    %613 = vmatprep.mubr.bf16.mxu0 0
    %614 = vmatmul.mubr.bf16.gmra.mrb[0].mxu0 %v576
    %v615 = vpop.f32.mrb[0].mxu0
    %v616 = vadd.f32 0.0, %v615
    %v617 = vpop.f32.mrb[0].mxu0
    %v618 = vpop.f32.mrb[0].mxu0
    %v619 = vpop.f32.mrb[0].mxu0
    %620 = vdwg.mxu0
    %v621 = vpack.c.bf16 %v616, %v616
    %623 = vrot.lane.b32.xlu0 %v621, 24
    %v624 = vpop.permute.xlu0 %623
    %vm626 = vcmask 257216
    %627 = vst.msk [vmem:[#allocation2] sm:$0xf] %vm626, %v624
    %v628 = vrot.slane %v162, 4
    %629 = vrot.lane.b32.xlu0 %v628, 96
    %v630 = vpop.permute.xlu0 %629
    %v632 = vsel %vm166, %v628, 0
    %v635 = vsel %vm166, %v630, 0
    %637 = vmatprep.subr.bf16.mxu0 0
    %638 = vmatpush1.bf16.xpose.msra.mxu0 %v635
    %639 = vmatprep.subr.bf16.mxu0 0
    %640 = vmatpush1.bf16.xpose.msra.mxu0 0
    %641 = vmatprep.subr.bf16.mxu0 0
    %642 = vmatpush1.bf16.xpose.msra.mxu0 0
    %643 = vmatprep.subr.bf16.mxu0 0
    %644 = vmatpush1.bf16.xpose.msra.mxu0 0
    %645 = vmatprep.subr.bf16.mxu0 0
    %646 = vmatpush1.bf16.xpose.msra.mxu0 0
    %647 = vmatprep.subr.bf16.mxu0 0
    %648 = vmatpush1.bf16.xpose.msra.mxu0 0
    %649 = vmatprep.subr.bf16.mxu0 0
    %650 = vmatpush1.bf16.xpose.msra.mxu0 0
    %651 = vmatprep.subr.bf16.mxu0 0
    %652 = vmatpush1.bf16.xpose.msra.mxu0 0
    %653 = vmatprep.subr.bf16.mxu0 0
    %654 = vmatpush1.bf16.xpose.msra.mxu0 0
    %655 = vmatprep.subr.bf16.mxu0 0
    %656 = vmatpush1.bf16.xpose.msra.mxu0 0
    %657 = vmatprep.subr.bf16.mxu0 0
    %658 = vmatpush1.bf16.xpose.msra.mxu0 0
    %659 = vmatprep.subr.bf16.mxu0 0
    %660 = vmatpush1.bf16.xpose.msra.mxu0 0
    %661 = vmatprep.subr.bf16.mxu0 0
    %662 = vmatpush1.bf16.xpose.msra.mxu0 0
    %663 = vmatprep.subr.bf16.mxu0 0
    %664 = vmatpush1.bf16.xpose.msra.mxu0 0
    %665 = vmatprep.subr.bf16.mxu0 0
    %666 = vmatpush1.bf16.xpose.msra.mxu0 0
    %667 = vmatprep.subr.bf16.mxu0 0
    %668 = vmatpush1.bf16.xpose.msra.mxu0 0
    %669 = vmatprep.mubr.bf16.mxu0 0
    %670 = vmatmul.mubr.bf16.gmra.mrb[0].mxu0 %v632
    %v671 = vpop.f32.mrb[0].mxu0
    %v672 = vadd.f32 0.0, %v671
    %v673 = vpop.f32.mrb[0].mxu0
    %v674 = vpop.f32.mrb[0].mxu0
    %v675 = vpop.f32.mrb[0].mxu0
    %676 = vdwg.mxu0
    %v677 = vsel %vm166, %v672, -inf
    %678 = vmax.xlane.f32.xlu0 %v677
    %v679 = vpop.xlane.xlu0 %678
    %v680 = vsub.f32 %v672, %v679
    %v681 = vmul.f32 %v680, 1.442695
    %v682 = vpow.pop %v681
    %v683 = vsel %vm166, %v682, 0.0
    %684 = vadd.xlane.f32.xlu0 %v683
    %v685 = vpop.xlane.xlu0 %684
    %v686 = vrcp.pop %v685
    %v687 = vmul.f32 %v682, %v686
    %v688 = vpack.c.bf16 %v687, %v687
    %689 = vrot.lane.b32.xlu0 %v628, 64
    %v690 = vpop.permute.xlu0 %689
    %v692 = vsel %vm166, %v688, 0
    %v695 = vsel %vm230, %v690, 0
    %697 = vmatprep.subr.bf16.mxu0 0
    %698 = vmatpush1.bf16.msra.mxu0 %v695
    %699 = vmatprep.subr.bf16.mxu0 0
    %700 = vmatpush1.bf16.msra.mxu0 0
    %701 = vmatprep.subr.bf16.mxu0 0
    %702 = vmatpush1.bf16.msra.mxu0 0
    %703 = vmatprep.subr.bf16.mxu0 0
    %704 = vmatpush1.bf16.msra.mxu0 0
    %705 = vmatprep.subr.bf16.mxu0 0
    %706 = vmatpush1.bf16.msra.mxu0 0
    %707 = vmatprep.subr.bf16.mxu0 0
    %708 = vmatpush1.bf16.msra.mxu0 0
    %709 = vmatprep.subr.bf16.mxu0 0
    %710 = vmatpush1.bf16.msra.mxu0 0
    %711 = vmatprep.subr.bf16.mxu0 0
    %712 = vmatpush1.bf16.msra.mxu0 0
    %713 = vmatprep.subr.bf16.mxu0 0
    %714 = vmatpush1.bf16.msra.mxu0 0
    %715 = vmatprep.subr.bf16.mxu0 0
    %716 = vmatpush1.bf16.msra.mxu0 0
    %717 = vmatprep.subr.bf16.mxu0 0
    %718 = vmatpush1.bf16.msra.mxu0 0
    %719 = vmatprep.subr.bf16.mxu0 0
    %720 = vmatpush1.bf16.msra.mxu0 0
    %721 = vmatprep.subr.bf16.mxu0 0
    %722 = vmatpush1.bf16.msra.mxu0 0
    %723 = vmatprep.subr.bf16.mxu0 0
    %724 = vmatpush1.bf16.msra.mxu0 0
    %725 = vmatprep.subr.bf16.mxu0 0
    %726 = vmatpush1.bf16.msra.mxu0 0
    %727 = vmatprep.subr.bf16.mxu0 0
    %728 = vmatpush1.bf16.msra.mxu0 0
    %729 = vmatprep.mubr.bf16.mxu0 0
    %730 = vmatmul.mubr.bf16.gmra.mrb[0].mxu0 %v692
    %v731 = vpop.f32.mrb[0].mxu0
    %v732 = vadd.f32 0.0, %v731
    %v733 = vpop.f32.mrb[0].mxu0
    %v734 = vpop.f32.mrb[0].mxu0
    %v735 = vpop.f32.mrb[0].mxu0
    %736 = vdwg.mxu0
    %v737 = vpack.c.bf16 %v732, %v732
    %v739 = vrot.slane %v737, 4
    %vm741 = vcmask 64516
    %742 = vst.msk [vmem:[#allocation2] sm:$0xf0] %vm741, %v739
    %743 = vrot.lane.b32.xlu0 %v628, 120
    %v744 = vpop.permute.xlu0 %743
    %745 = vrot.lane.b32.xlu0 %v628, 88
    %v746 = vpop.permute.xlu0 %745
    %v748 = vsel %vm166, %v744, 0
    %v751 = vsel %vm166, %v746, 0
    %753 = vmatprep.subr.bf16.mxu0 0
    %754 = vmatpush1.bf16.xpose.msra.mxu0 %v751
    %755 = vmatprep.subr.bf16.mxu0 0
    %756 = vmatpush1.bf16.xpose.msra.mxu0 0
    %757 = vmatprep.subr.bf16.mxu0 0
    %758 = vmatpush1.bf16.xpose.msra.mxu0 0
    %759 = vmatprep.subr.bf16.mxu0 0
    %760 = vmatpush1.bf16.xpose.msra.mxu0 0
    %761 = vmatprep.subr.bf16.mxu0 0
    %762 = vmatpush1.bf16.xpose.msra.mxu0 0
    %763 = vmatprep.subr.bf16.mxu0 0
    %764 = vmatpush1.bf16.xpose.msra.mxu0 0
    %765 = vmatprep.subr.bf16.mxu0 0
    %766 = vmatpush1.bf16.xpose.msra.mxu0 0
    %767 = vmatprep.subr.bf16.mxu0 0
    %768 = vmatpush1.bf16.xpose.msra.mxu0 0
    %769 = vmatprep.subr.bf16.mxu0 0
    %770 = vmatpush1.bf16.xpose.msra.mxu0 0
    %771 = vmatprep.subr.bf16.mxu0 0
    %772 = vmatpush1.bf16.xpose.msra.mxu0 0
    %773 = vmatprep.subr.bf16.mxu0 0
    %774 = vmatpush1.bf16.xpose.msra.mxu0 0
    %775 = vmatprep.subr.bf16.mxu0 0
    %776 = vmatpush1.bf16.xpose.msra.mxu0 0
    %777 = vmatprep.subr.bf16.mxu0 0
    %778 = vmatpush1.bf16.xpose.msra.mxu0 0
    %779 = vmatprep.subr.bf16.mxu0 0
    %780 = vmatpush1.bf16.xpose.msra.mxu0 0
    %781 = vmatprep.subr.bf16.mxu0 0
    %782 = vmatpush1.bf16.xpose.msra.mxu0 0
    %783 = vmatprep.subr.bf16.mxu0 0
    %784 = vmatpush1.bf16.xpose.msra.mxu0 0
    %785 = vmatprep.mubr.bf16.mxu0 0
    %786 = vmatmul.mubr.bf16.gmra.mrb[0].mxu0 %v748
    %v787 = vpop.f32.mrb[0].mxu0
    %v788 = vadd.f32 0.0, %v787
    %v789 = vpop.f32.mrb[0].mxu0
    %v790 = vpop.f32.mrb[0].mxu0
    %v791 = vpop.f32.mrb[0].mxu0
    %792 = vdwg.mxu0
    %v793 = vsel %vm166, %v788, -inf
    %794 = vmax.xlane.f32.xlu0 %v793
    %v795 = vpop.xlane.xlu0 %794
    %v796 = vsub.f32 %v788, %v795
    %v797 = vmul.f32 %v796, 1.442695
    %v798 = vpow.pop %v797
    %v799 = vsel %vm166, %v798, 0.0
    %800 = vadd.xlane.f32.xlu0 %v799
    %v801 = vpop.xlane.xlu0 %800
    %v802 = vrcp.pop %v801
    %v803 = vmul.f32 %v798, %v802
    %v804 = vpack.c.bf16 %v803, %v803
    %805 = vrot.lane.b32.xlu0 %v628, 56
    %v806 = vpop.permute.xlu0 %805
    %v808 = vsel %vm166, %v804, 0
    %v811 = vsel %vm230, %v806, 0
    %813 = vmatprep.subr.bf16.mxu0 0
    %814 = vmatpush1.bf16.msra.mxu0 %v811
    %815 = vmatprep.subr.bf16.mxu0 0
    %816 = vmatpush1.bf16.msra.mxu0 0
    %817 = vmatprep.subr.bf16.mxu0 0
    %818 = vmatpush1.bf16.msra.mxu0 0
    %819 = vmatprep.subr.bf16.mxu0 0
    %820 = vmatpush1.bf16.msra.mxu0 0
    %821 = vmatprep.subr.bf16.mxu0 0
    %822 = vmatpush1.bf16.msra.mxu0 0
    %823 = vmatprep.subr.bf16.mxu0 0
    %824 = vmatpush1.bf16.msra.mxu0 0
    %825 = vmatprep.subr.bf16.mxu0 0
    %826 = vmatpush1.bf16.msra.mxu0 0
    %827 = vmatprep.subr.bf16.mxu0 0
    %828 = vmatpush1.bf16.msra.mxu0 0
    %829 = vmatprep.subr.bf16.mxu0 0
    %830 = vmatpush1.bf16.msra.mxu0 0
    %831 = vmatprep.subr.bf16.mxu0 0
    %832 = vmatpush1.bf16.msra.mxu0 0
    %833 = vmatprep.subr.bf16.mxu0 0
    %834 = vmatpush1.bf16.msra.mxu0 0
    %835 = vmatprep.subr.bf16.mxu0 0
    %836 = vmatpush1.bf16.msra.mxu0 0
    %837 = vmatprep.subr.bf16.mxu0 0
    %838 = vmatpush1.bf16.msra.mxu0 0
    %839 = vmatprep.subr.bf16.mxu0 0
    %840 = vmatpush1.bf16.msra.mxu0 0
    %841 = vmatprep.subr.bf16.mxu0 0
    %842 = vmatpush1.bf16.msra.mxu0 0
    %843 = vmatprep.subr.bf16.mxu0 0
    %844 = vmatpush1.bf16.msra.mxu0 0
    %845 = vmatprep.mubr.bf16.mxu0 0
    %846 = vmatmul.mubr.bf16.gmra.mrb[0].mxu0 %v808
    %v847 = vpop.f32.mrb[0].mxu0
    %v848 = vadd.f32 0.0, %v847
    %v849 = vpop.f32.mrb[0].mxu0
    %v850 = vpop.f32.mrb[0].mxu0
    %v851 = vpop.f32.mrb[0].mxu0
    %852 = vdwg.mxu0
    %v853 = vpack.c.bf16 %v848, %v848
    %v855 = vrot.slane %v853, 4
    %856 = vrot.lane.b32.xlu0 %v855, 8
    %v857 = vpop.permute.xlu0 %856
    %vm859 = vcmask 130116
    %860 = vst.msk [vmem:[#allocation2] sm:$0xf0] %vm859, %v857
    %861 = vrot.lane.b32.xlu0 %v628, 112
    %v862 = vpop.permute.xlu0 %861
    %863 = vrot.lane.b32.xlu0 %v628, 80
    %v864 = vpop.permute.xlu0 %863
    %v866 = vsel %vm166, %v862, 0
    %v869 = vsel %vm166, %v864, 0
    %871 = vmatprep.subr.bf16.mxu0 0
    %872 = vmatpush1.bf16.xpose.msra.mxu0 %v869
    %873 = vmatprep.subr.bf16.mxu0 0
    %874 = vmatpush1.bf16.xpose.msra.mxu0 0
    %875 = vmatprep.subr.bf16.mxu0 0
    %876 = vmatpush1.bf16.xpose.msra.mxu0 0
    %877 = vmatprep.subr.bf16.mxu0 0
    %878 = vmatpush1.bf16.xpose.msra.mxu0 0
    %879 = vmatprep.subr.bf16.mxu0 0
    %880 = vmatpush1.bf16.xpose.msra.mxu0 0
    %881 = vmatprep.subr.bf16.mxu0 0
    %882 = vmatpush1.bf16.xpose.msra.mxu0 0
    %883 = vmatprep.subr.bf16.mxu0 0
    %884 = vmatpush1.bf16.xpose.msra.mxu0 0
    %885 = vmatprep.subr.bf16.mxu0 0
    %886 = vmatpush1.bf16.xpose.msra.mxu0 0
    %887 = vmatprep.subr.bf16.mxu0 0
    %888 = vmatpush1.bf16.xpose.msra.mxu0 0
    %889 = vmatprep.subr.bf16.mxu0 0
    %890 = vmatpush1.bf16.xpose.msra.mxu0 0
    %891 = vmatprep.subr.bf16.mxu0 0
    %892 = vmatpush1.bf16.xpose.msra.mxu0 0
    %893 = vmatprep.subr.bf16.mxu0 0
    %894 = vmatpush1.bf16.xpose.msra.mxu0 0
    %895 = vmatprep.subr.bf16.mxu0 0
    %896 = vmatpush1.bf16.xpose.msra.mxu0 0
    %897 = vmatprep.subr.bf16.mxu0 0
    %898 = vmatpush1.bf16.xpose.msra.mxu0 0
    %899 = vmatprep.subr.bf16.mxu0 0
    %900 = vmatpush1.bf16.xpose.msra.mxu0 0
    %901 = vmatprep.subr.bf16.mxu0 0
    %902 = vmatpush1.bf16.xpose.msra.mxu0 0
    %903 = vmatprep.mubr.bf16.mxu0 0
    %904 = vmatmul.mubr.bf16.gmra.mrb[0].mxu0 %v866
    %v905 = vpop.f32.mrb[0].mxu0
    %v906 = vadd.f32 0.0, %v905
    %v907 = vpop.f32.mrb[0].mxu0
    %v908 = vpop.f32.mrb[0].mxu0
    %v909 = vpop.f32.mrb[0].mxu0
    %910 = vdwg.mxu0
    %v911 = vsel %vm166, %v906, -inf
    %912 = vmax.xlane.f32.xlu0 %v911
    %v913 = vpop.xlane.xlu0 %912
    %v914 = vsub.f32 %v906, %v913
    %v915 = vmul.f32 %v914, 1.442695
    %v916 = vpow.pop %v915
    %v917 = vsel %vm166, %v916, 0.0
    %918 = vadd.xlane.f32.xlu0 %v917
    %v919 = vpop.xlane.xlu0 %918
    %v920 = vrcp.pop %v919
    %v921 = vmul.f32 %v916, %v920
    %v922 = vpack.c.bf16 %v921, %v921
    %923 = vrot.lane.b32.xlu0 %v628, 48
    %v924 = vpop.permute.xlu0 %923
    %v926 = vsel %vm166, %v922, 0
    %v929 = vsel %vm230, %v924, 0
    %931 = vmatprep.subr.bf16.mxu0 0
    %932 = vmatpush1.bf16.msra.mxu0 %v929
    %933 = vmatprep.subr.bf16.mxu0 0
    %934 = vmatpush1.bf16.msra.mxu0 0
    %935 = vmatprep.subr.bf16.mxu0 0
    %936 = vmatpush1.bf16.msra.mxu0 0
    %937 = vmatprep.subr.bf16.mxu0 0
    %938 = vmatpush1.bf16.msra.mxu0 0
    %939 = vmatprep.subr.bf16.mxu0 0
    %940 = vmatpush1.bf16.msra.mxu0 0
    %941 = vmatprep.subr.bf16.mxu0 0
    %942 = vmatpush1.bf16.msra.mxu0 0
    %943 = vmatprep.subr.bf16.mxu0 0
    %944 = vmatpush1.bf16.msra.mxu0 0
    %945 = vmatprep.subr.bf16.mxu0 0
    %946 = vmatpush1.bf16.msra.mxu0 0
    %947 = vmatprep.subr.bf16.mxu0 0
    %948 = vmatpush1.bf16.msra.mxu0 0
    %949 = vmatprep.subr.bf16.mxu0 0
    %950 = vmatpush1.bf16.msra.mxu0 0
    %951 = vmatprep.subr.bf16.mxu0 0
    %952 = vmatpush1.bf16.msra.mxu0 0
    %953 = vmatprep.subr.bf16.mxu0 0
    %954 = vmatpush1.bf16.msra.mxu0 0
    %955 = vmatprep.subr.bf16.mxu0 0
    %956 = vmatpush1.bf16.msra.mxu0 0
    %957 = vmatprep.subr.bf16.mxu0 0
    %958 = vmatpush1.bf16.msra.mxu0 0
    %959 = vmatprep.subr.bf16.mxu0 0
    %960 = vmatpush1.bf16.msra.mxu0 0
    %961 = vmatprep.subr.bf16.mxu0 0
    %962 = vmatpush1.bf16.msra.mxu0 0
    %963 = vmatprep.mubr.bf16.mxu0 0
    %964 = vmatmul.mubr.bf16.gmra.mrb[0].mxu0 %v926
    %v965 = vpop.f32.mrb[0].mxu0
    %v966 = vadd.f32 0.0, %v965
    %v967 = vpop.f32.mrb[0].mxu0
    %v968 = vpop.f32.mrb[0].mxu0
    %v969 = vpop.f32.mrb[0].mxu0
    %970 = vdwg.mxu0
    %v971 = vpack.c.bf16 %v966, %v966
    %v973 = vrot.slane %v971, 4
    %974 = vrot.lane.b32.xlu0 %v973, 16
    %v975 = vpop.permute.xlu0 %974
    %vm977 = vcmask 195716
    %978 = vst.msk [vmem:[#allocation2] sm:$0xf0] %vm977, %v975
    %979 = vrot.lane.b32.xlu0 %v628, 104
    %v980 = vpop.permute.xlu0 %979
    %981 = vrot.lane.b32.xlu0 %v628, 72
    %v982 = vpop.permute.xlu0 %981
    %v984 = vsel %vm166, %v980, 0
    %v987 = vsel %vm166, %v982, 0
    %989 = vmatprep.subr.bf16.mxu0 0
    %990 = vmatpush1.bf16.xpose.msra.mxu0 %v987
    %991 = vmatprep.subr.bf16.mxu0 0
    %992 = vmatpush1.bf16.xpose.msra.mxu0 0
    %993 = vmatprep.subr.bf16.mxu0 0
    %994 = vmatpush1.bf16.xpose.msra.mxu0 0
    %995 = vmatprep.subr.bf16.mxu0 0
    %996 = vmatpush1.bf16.xpose.msra.mxu0 0
    %997 = vmatprep.subr.bf16.mxu0 0
    %998 = vmatpush1.bf16.xpose.msra.mxu0 0
    %999 = vmatprep.subr.bf16.mxu0 0
    %1000 = vmatpush1.bf16.xpose.msra.mxu0 0
    %1001 = vmatprep.subr.bf16.mxu0 0
    %1002 = vmatpush1.bf16.xpose.msra.mxu0 0
    %1003 = vmatprep.subr.bf16.mxu0 0
    %1004 = vmatpush1.bf16.xpose.msra.mxu0 0
    %1005 = vmatprep.subr.bf16.mxu0 0
    %1006 = vmatpush1.bf16.xpose.msra.mxu0 0
    %1007 = vmatprep.subr.bf16.mxu0 0
    %1008 = vmatpush1.bf16.xpose.msra.mxu0 0
    %1009 = vmatprep.subr.bf16.mxu0 0
    %1010 = vmatpush1.bf16.xpose.msra.mxu0 0
    %1011 = vmatprep.subr.bf16.mxu0 0
    %1012 = vmatpush1.bf16.xpose.msra.mxu0 0
    %1013 = vmatprep.subr.bf16.mxu0 0
    %1014 = vmatpush1.bf16.xpose.msra.mxu0 0
    %1015 = vmatprep.subr.bf16.mxu0 0
    %1016 = vmatpush1.bf16.xpose.msra.mxu0 0
    %1017 = vmatprep.subr.bf16.mxu0 0
    %1018 = vmatpush1.bf16.xpose.msra.mxu0 0
    %1019 = vmatprep.subr.bf16.mxu0 0
    %1020 = vmatpush1.bf16.xpose.msra.mxu0 0
    %1021 = vmatprep.mubr.bf16.mxu0 0
    %1022 = vmatmul.mubr.bf16.gmra.mrb[0].mxu0 %v984
    %v1023 = vpop.f32.mrb[0].mxu0
    %v1024 = vadd.f32 0.0, %v1023
    %v1025 = vpop.f32.mrb[0].mxu0
    %v1026 = vpop.f32.mrb[0].mxu0
    %v1027 = vpop.f32.mrb[0].mxu0
    %1028 = vdwg.mxu0
    %v1029 = vsel %vm166, %v1024, -inf
    %1030 = vmax.xlane.f32.xlu0 %v1029
    %v1031 = vpop.xlane.xlu0 %1030
    %v1032 = vsub.f32 %v1024, %v1031
    %v1033 = vmul.f32 %v1032, 1.442695
    %v1034 = vpow.pop %v1033
    %v1035 = vsel %vm166, %v1034, 0.0
    %1036 = vadd.xlane.f32.xlu0 %v1035
    %v1037 = vpop.xlane.xlu0 %1036
    %v1038 = vrcp.pop %v1037
    %v1039 = vmul.f32 %v1034, %v1038
    %v1040 = vpack.c.bf16 %v1039, %v1039
    %1041 = vrot.lane.b32.xlu0 %v628, 40
    %v1042 = vpop.permute.xlu0 %1041
    %v1044 = vsel %vm166, %v1040, 0
    %v1047 = vsel %vm230, %v1042, 0
    %1049 = vmatprep.subr.bf16.mxu0 0
    %1050 = vmatpush1.bf16.msra.mxu0 %v1047
    %1051 = vmatprep.subr.bf16.mxu0 0
    %1052 = vmatpush1.bf16.msra.mxu0 0
    %1053 = vmatprep.subr.bf16.mxu0 0
    %1054 = vmatpush1.bf16.msra.mxu0 0
    %1055 = vmatprep.subr.bf16.mxu0 0
    %1056 = vmatpush1.bf16.msra.mxu0 0
    %1057 = vmatprep.subr.bf16.mxu0 0
    %1058 = vmatpush1.bf16.msra.mxu0 0
    %1059 = vmatprep.subr.bf16.mxu0 0
    %1060 = vmatpush1.bf16.msra.mxu0 0
    %1061 = vmatprep.subr.bf16.mxu0 0
    %1062 = vmatpush1.bf16.msra.mxu0 0
    %1063 = vmatprep.subr.bf16.mxu0 0
    %1064 = vmatpush1.bf16.msra.mxu0 0
    %1065 = vmatprep.subr.bf16.mxu0 0
    %1066 = vmatpush1.bf16.msra.mxu0 0
    %1067 = vmatprep.subr.bf16.mxu0 0
    %1068 = vmatpush1.bf16.msra.mxu0 0
    %1069 = vmatprep.subr.bf16.mxu0 0
    %1070 = vmatpush1.bf16.msra.mxu0 0
    %1071 = vmatprep.subr.bf16.mxu0 0
    %1072 = vmatpush1.bf16.msra.mxu0 0
    %1073 = vmatprep.subr.bf16.mxu0 0
    %1074 = vmatpush1.bf16.msra.mxu0 0
    %1075 = vmatprep.subr.bf16.mxu0 0
    %1076 = vmatpush1.bf16.msra.mxu0 0
    %1077 = vmatprep.subr.bf16.mxu0 0
    %1078 = vmatpush1.bf16.msra.mxu0 0
    %1079 = vmatprep.subr.bf16.mxu0 0
    %1080 = vmatpush1.bf16.msra.mxu0 0
    %1081 = vmatprep.mubr.bf16.mxu0 0
    %1082 = vmatmul.mubr.bf16.gmra.mrb[0].mxu0 %v1044
    %v1083 = vpop.f32.mrb[0].mxu0
    %v1084 = vadd.f32 0.0, %v1083
    %v1085 = vpop.f32.mrb[0].mxu0
    %v1086 = vpop.f32.mrb[0].mxu0
    %v1087 = vpop.f32.mrb[0].mxu0
    %1088 = vdwg.mxu0
    %v1089 = vpack.c.bf16 %v1084, %v1084
    %v1091 = vrot.slane %v1089, 4
    %1092 = vrot.lane.b32.xlu0 %v1091, 24
    %v1093 = vpop.permute.xlu0 %1092
    %vm1095 = vcmask 261316
    %1096 = vst.msk [vmem:[#allocation2] sm:$0xf0] %vm1095, %v1093
    %v1097 = vld [vmem:[#allocation2] sm:$0xff]
    %v1098 = vld [vmem:[%s5] sm:$0xf]
    %v1099 = vld [vmem:[%s5 + $0x4] sm:$0xf]
    %v1100 = vld [vmem:[%s5 + $0x8] sm:$0xf]
    %v1101 = vld [vmem:[%s5 + $0xc] sm:$0xf]
    %v1102 = vld [vmem:[%s6] sm:$0x1]
    %v1104 = vlaneseq
    %v1105 = vshrl.u32 %v1104, 7
    %v1106 = vsub.s32 0, %v1105
    %v1107 = vrot.slane %v1102, %v1106
    %v1113 = vunpack.c.l.b16 %v1098
    %v1114 = vunpack.c.l.b16 %v1099
    %v1115 = vunpack.c.l.b16 %v1100
    %v1116 = vunpack.c.l.b16 %v1101
    %v1117 = vpack.c.b16 %v1114, %v1113
    %v1118 = vpack.c.b16 %v1116, %v1115
    %v1122 = vsel %vm50, %v1097, 0
    %1124 = vmatprep.subr.bf16.mxu0 0
    %1125 = vmatpush1.bf16.msra.mxu0 %v1117
    %1126 = vmatprep.subr.bf16.mxu0 0
    %1127 = vmatpush1.bf16.msra.mxu0 %v1118
    %1128 = vmatprep.subr.bf16.mxu0 0
    %1129 = vmatpush1.bf16.msra.mxu0 0
    %1130 = vmatprep.subr.bf16.mxu0 0
    %1131 = vmatpush1.bf16.msra.mxu0 0
    %1132 = vmatprep.subr.bf16.mxu0 0
    %1133 = vmatpush1.bf16.msra.mxu0 0
    %1134 = vmatprep.subr.bf16.mxu0 0
    %1135 = vmatpush1.bf16.msra.mxu0 0
    %1136 = vmatprep.subr.bf16.mxu0 0
    %1137 = vmatpush1.bf16.msra.mxu0 0
    %1138 = vmatprep.subr.bf16.mxu0 0
    %1139 = vmatpush1.bf16.msra.mxu0 0
    %1140 = vmatprep.subr.bf16.mxu0 0
    %1141 = vmatpush1.bf16.msra.mxu0 0
    %1142 = vmatprep.subr.bf16.mxu0 0
    %1143 = vmatpush1.bf16.msra.mxu0 0
    %1144 = vmatprep.subr.bf16.mxu0 0
    %1145 = vmatpush1.bf16.msra.mxu0 0
    %1146 = vmatprep.subr.bf16.mxu0 0
    %1147 = vmatpush1.bf16.msra.mxu0 0
    %1148 = vmatprep.subr.bf16.mxu0 0
    %1149 = vmatpush1.bf16.msra.mxu0 0
    %1150 = vmatprep.subr.bf16.mxu0 0
    %1151 = vmatpush1.bf16.msra.mxu0 0
    %1152 = vmatprep.subr.bf16.mxu0 0
    %1153 = vmatpush1.bf16.msra.mxu0 0
    %1154 = vmatprep.subr.bf16.mxu0 0
    %1155 = vmatpush1.bf16.msra.mxu0 0
    %1156 = vmatprep.mubr.bf16.mxu0 0
    %1157 = vmatmul.mubr.bf16.gmra.mrb[0].mxu0 %v1122
    %v1158 = vpop.f32.mrb[0].mxu0
    %v1159 = vadd.f32 %v1107, %v1158
    %v1160 = vpop.f32.mrb[0].mxu0
    %v1161 = vpop.f32.mrb[0].mxu0
    %v1162 = vadd.f32 %v1107, %v1161
    %v1163 = vpop.f32.mrb[0].mxu0
    %1164 = vdwg.mxu0
    %v1165 = vadd.f32 %v46, %v1159
    %v1166 = vadd.f32 %v47, %v1162
    %v1167 = vld [vmem:[%s7] sm:$0x1]
    %v1168 = vld [vmem:[%s8] sm:$0x1]
    %v1169 = vsel %vm50, %v1165, 0.0
    %1170 = vadd.xlane.f32.xlu0 %v1169
    %v1171 = vpop.xlane.xlu0 %1170
    %v1172 = vsel %vm50, %v1166, 0.0
    %1173 = vadd.xlane.f32.xlu0 %v1172
    %v1174 = vpop.xlane.xlu0 %1173
    %v1175 = vmul.f32 %v1171, %v57
    %v1176 = vmul.f32 %v1174, %v57
    %v1177 = vsub.f32 %v1165, %v1175
    %v1178 = vsub.f32 %v1166, %v1176
    %v1179 = vmul.f32 %v1177, %v1177
    %v1180 = vmul.f32 %v1178, %v1178
    %v1181 = vsel %vm50, %v1179, 0.0
    %1182 = vadd.xlane.f32.xlu0 %v1181
    %v1183 = vpop.xlane.xlu0 %1182
    %v1184 = vsel %vm50, %v1180, 0.0
    %1185 = vadd.xlane.f32.xlu0 %v1184
    %v1186 = vpop.xlane.xlu0 %1185
    %v1187 = vmul.f32 %v1183, %v57
    %v1188 = vmul.f32 %v1186, %v57
    %v1189 = vadd.f32 %v1187, 1e-05
    %v1190 = vadd.f32 %v1188, 1e-05
    %v1191 = vrsqrt.pop %v1189
    %v1192 = vrsqrt.pop %v1190
    %v1193 = vmul.f32 %v1177, %v1191
    %v1194 = vmul.f32 %v1178, %v1192
    %v1196 = vlaneseq
    %v1197 = vshrl.u32 %v1196, 7
    %v1198 = vsub.s32 0, %v1197
    %v1199 = vrot.slane %v1167, %v1198
    %v1201 = vmul.f32 %v1193, %v1199
    %v1202 = vmul.f32 %v1194, %v1199
    %v1204 = vlaneseq
    %v1205 = vshrl.u32 %v1204, 7
    %v1206 = vsub.s32 0, %v1205
    %v1207 = vrot.slane %v1168, %v1206
    %v1209 = vadd.f32 %v1201, %v1207
    %v1210 = vadd.f32 %v1202, %v1207
    %v1211 = vpack.c.bf16 %v1210, %v1209
    %v1212 = vld [vmem:[%s9] sm:$0xf]
    %v1213 = vld [vmem:[%s9 + $0x4] sm:$0xf]
    %v1214 = vld [vmem:[%s9 + $0x8] sm:$0xf]
    %v1215 = vld [vmem:[%s9 + $0xc] sm:$0xf]
    %v1216 = vld [vmem:[%s10] sm:$0x1]
    %v1218 = vlaneseq
    %v1219 = vshrl.u32 %v1218, 7
    %v1220 = vsub.s32 0, %v1219
    %v1221 = vrot.slane %v1216, %v1220
    %v1227 = vunpack.c.l.b16 %v1212
    %v1228 = vunpack.c.l.b16 %v1213
    %v1229 = vunpack.c.l.b16 %v1214
    %v1230 = vunpack.c.l.b16 %v1215
    %v1231 = vpack.c.b16 %v1228, %v1227
    %v1232 = vpack.c.b16 %v1230, %v1229
    %v1236 = vsel %vm50, %v1211, 0
    %1238 = vmatprep.subr.bf16.mxu0 0
    %1239 = vmatpush1.bf16.msra.mxu0 %v1231
    %1240 = vmatprep.subr.bf16.mxu0 0
    %1241 = vmatpush1.bf16.msra.mxu0 %v1232
    %1242 = vmatprep.subr.bf16.mxu0 0
    %1243 = vmatpush1.bf16.msra.mxu0 0
    %1244 = vmatprep.subr.bf16.mxu0 0
    %1245 = vmatpush1.bf16.msra.mxu0 0
    %1246 = vmatprep.subr.bf16.mxu0 0
    %1247 = vmatpush1.bf16.msra.mxu0 0
    %1248 = vmatprep.subr.bf16.mxu0 0
    %1249 = vmatpush1.bf16.msra.mxu0 0
    %1250 = vmatprep.subr.bf16.mxu0 0
    %1251 = vmatpush1.bf16.msra.mxu0 0
    %1252 = vmatprep.subr.bf16.mxu0 0
    %1253 = vmatpush1.bf16.msra.mxu0 0
    %1254 = vmatprep.subr.bf16.mxu0 0
    %1255 = vmatpush1.bf16.msra.mxu0 0
    %1256 = vmatprep.subr.bf16.mxu0 0
    %1257 = vmatpush1.bf16.msra.mxu0 0
    %1258 = vmatprep.subr.bf16.mxu0 0
    %1259 = vmatpush1.bf16.msra.mxu0 0
    %1260 = vmatprep.subr.bf16.mxu0 0
    %1261 = vmatpush1.bf16.msra.mxu0 0
    %1262 = vmatprep.subr.bf16.mxu0 0
    %1263 = vmatpush1.bf16.msra.mxu0 0
    %1264 = vmatprep.subr.bf16.mxu0 0
    %1265 = vmatpush1.bf16.msra.mxu0 0
    %1266 = vmatprep.subr.bf16.mxu0 0
    %1267 = vmatpush1.bf16.msra.mxu0 0
    %1268 = vmatprep.subr.bf16.mxu0 0
    %1269 = vmatpush1.bf16.msra.mxu0 0
    %1270 = vmatprep.mubr.bf16.mxu0 0
    %1271 = vmatmul.mubr.bf16.gmra.mrb[0].mxu0 %v1236
    %v1272 = vpop.f32.mrb[0].mxu0
    %v1273 = vadd.f32 %v1221, %v1272
    %v1274 = vpop.f32.mrb[0].mxu0
    %v1275 = vpop.f32.mrb[0].mxu0
    %v1276 = vadd.f32 %v1221, %v1275
    %v1277 = vpop.f32.mrb[0].mxu0
    %1278 = vdwg.mxu0
    %v1279 = vmul.f32 %v1273, 1.702
    %v1280 = vmul.f32 %v1276, 1.702
    %v1281 = vxor.u32 %v1279, 2147483648
    %v1282 = vxor.u32 %v1280, 2147483648
    %v1283 = vmul.f32 %v1281, 1.442695
    %v1284 = vpow.pop %v1283
    %v1285 = vmul.f32 %v1282, 1.442695
    %v1286 = vpow.pop %v1285
    %v1287 = vadd.f32 %v1284, 1.0
    %v1288 = vadd.f32 %v1286, 1.0
    %v1289 = vrcp.pop %v1287
    %v1290 = vmul.f32 1.0, %v1289
    %v1291 = vrcp.pop %v1288
    %v1292 = vmul.f32 1.0, %v1291
    %v1293 = vmul.f32 %v1273, %v1290
    %v1294 = vmul.f32 %v1276, %v1292
    %v1295 = vpack.c.bf16 %v1294, %v1293
    %v1296 = vld [vmem:[%s11] sm:$0xf]
    %v1297 = vld [vmem:[%s11 + $0x4] sm:$0xf]
    %v1298 = vld [vmem:[%s11 + $0x8] sm:$0xf]
    %v1299 = vld [vmem:[%s11 + $0xc] sm:$0xf]
    %v1300 = vld [vmem:[%s11 + $0x10] sm:$0xf]
    %v1301 = vld [vmem:[%s11 + $0x14] sm:$0xf]
    %v1302 = vld [vmem:[%s11 + $0x18] sm:$0xf]
    %v1303 = vld [vmem:[%s11 + $0x1c] sm:$0xf]
    %v1304 = vld [vmem:[%s11 + $0x20] sm:$0xf]
    %v1305 = vld [vmem:[%s11 + $0x24] sm:$0xf]
    %v1306 = vld [vmem:[%s11 + $0x28] sm:$0xf]
    %v1307 = vld [vmem:[%s11 + $0x2c] sm:$0xf]
    %v1308 = vld [vmem:[%s11 + $0x30] sm:$0xf]
    %v1309 = vld [vmem:[%s11 + $0x34] sm:$0xf]
    %v1310 = vld [vmem:[%s11 + $0x38] sm:$0xf]
    %v1311 = vld [vmem:[%s11 + $0x3c] sm:$0xf]
    %v1312 = vld [vmem:[%s12] sm:$0x1]
    %v1314 = vlaneseq
    %v1315 = vshrl.u32 %v1314, 7
    %v1316 = vsub.s32 0, %v1315
    %v1317 = vrot.slane %v1312, %v1316
    %v1335 = vunpack.c.l.b16 %v1296
    %v1336 = vunpack.c.l.b16 %v1297
    %v1337 = vunpack.c.l.b16 %v1298
    %v1338 = vunpack.c.l.b16 %v1299
    %v1339 = vunpack.c.l.b16 %v1300
    %v1340 = vunpack.c.l.b16 %v1301
    %v1341 = vunpack.c.l.b16 %v1302
    %v1342 = vunpack.c.l.b16 %v1303
    %v1343 = vunpack.c.l.b16 %v1304
    %v1344 = vunpack.c.l.b16 %v1305
    %v1345 = vunpack.c.l.b16 %v1306
    %v1346 = vunpack.c.l.b16 %v1307
    %v1347 = vunpack.c.l.b16 %v1308
    %v1348 = vunpack.c.l.b16 %v1309
    %v1349 = vunpack.c.l.b16 %v1310
    %v1350 = vunpack.c.l.b16 %v1311
    %v1351 = vpack.c.b16 %v1336, %v1335
    %v1352 = vpack.c.b16 %v1338, %v1337
    %v1353 = vpack.c.b16 %v1340, %v1339
    %v1354 = vpack.c.b16 %v1342, %v1341
    %v1355 = vpack.c.b16 %v1344, %v1343
    %v1356 = vpack.c.b16 %v1346, %v1345
    %v1357 = vpack.c.b16 %v1348, %v1347
    %v1358 = vpack.c.b16 %v1350, %v1349
    %1367 = vmatprep.subr.bf16.mxu0 0
    %1368 = vmatpush1.bf16.msra.mxu0 %v1351
    %1369 = vmatprep.subr.bf16.mxu0 0
    %1370 = vmatpush1.bf16.msra.mxu0 %v1352
    %1371 = vmatprep.subr.bf16.mxu0 0
    %1372 = vmatpush1.bf16.msra.mxu0 %v1353
    %1373 = vmatprep.subr.bf16.mxu0 0
    %1374 = vmatpush1.bf16.msra.mxu0 %v1354
    %1375 = vmatprep.subr.bf16.mxu0 0
    %1376 = vmatpush1.bf16.msra.mxu0 %v1355
    %1377 = vmatprep.subr.bf16.mxu0 0
    %1378 = vmatpush1.bf16.msra.mxu0 %v1356
    %1379 = vmatprep.subr.bf16.mxu0 0
    %1380 = vmatpush1.bf16.msra.mxu0 %v1357
    %1381 = vmatprep.subr.bf16.mxu0 0
    %1382 = vmatpush1.bf16.msra.mxu0 %v1358
    %1383 = vmatprep.subr.bf16.mxu0 0
    %1384 = vmatpush1.bf16.msra.mxu0 0
    %1385 = vmatprep.subr.bf16.mxu0 0
    %1386 = vmatpush1.bf16.msra.mxu0 0
    %1387 = vmatprep.subr.bf16.mxu0 0
    %1388 = vmatpush1.bf16.msra.mxu0 0
    %1389 = vmatprep.subr.bf16.mxu0 0
    %1390 = vmatpush1.bf16.msra.mxu0 0
    %1391 = vmatprep.subr.bf16.mxu0 0
    %1392 = vmatpush1.bf16.msra.mxu0 0
    %1393 = vmatprep.subr.bf16.mxu0 0
    %1394 = vmatpush1.bf16.msra.mxu0 0
    %1395 = vmatprep.subr.bf16.mxu0 0
    %1396 = vmatpush1.bf16.msra.mxu0 0
    %1397 = vmatprep.subr.bf16.mxu0 0
    %1398 = vmatpush1.bf16.msra.mxu0 0
    %1399 = vmatprep.mubr.bf16.mxu0 0
    %1400 = vmatmul.mubr.bf16.gmra.mrb[0].mxu0 %v1295
    %v1401 = vpop.f32.mrb[0].mxu0
    %v1402 = vadd.f32 %v1317, %v1401
    %v1403 = vpop.f32.mrb[0].mxu0
    %v1404 = vpop.f32.mrb[0].mxu0
    %v1405 = vadd.f32 %v1317, %v1404
    %v1406 = vpop.f32.mrb[0].mxu0
    %1407 = vdwg.mxu0
    %v1408 = vadd.f32 %v1165, %v1402
    %v1409 = vadd.f32 %v1166, %v1405
    %1410 = vst.msk [vmem:[#allocation3] sm:$0xff] %vm50, %v1408
    %1411 = vst.msk [vmem:[#allocation3 + $0x8] sm:$0xff] %vm50, %v1409
    // Predicated region
    $region54: #{tpu_custom_call.1} parent=1 // pred_check
      _
    $region55: #{tpu_custom_call.1} parent=1 // pred_check_branch
      %1413 = sbr.rel (0) target = $region57
    $region56: #{tpu_custom_call.1} parent=1 // pred_region
      %s1415 = ssub.s32 256, 256
      %1416 = vsyncadd [#allocation4], %s1415
      %s1417 = sshll.u32 [#allocation3], 4
      %s1418 = int_to_ptr.vmem [resolvable:$true] %s1417
      %1423 = dma.vmem_to_hbm [thread:$0]  %s1418, 256, %s13, [#allocation4], 128, 128, 8
    $region57: #{tpu_custom_call.1} parent=1 // pred_fallthru
      _
    // Predicated region
    $region58: #{tpu_custom_call.1} parent=1 // pred_check
      _
    $region59: #{tpu_custom_call.1} parent=1 // pred_check_branch
      %1425 = sbr.rel (0) target = $region61
    $region60: #{tpu_custom_call.1} parent=1 // pred_region
      %1426 = dma.done [#allocation4], 256
    $region61: #{tpu_custom_call.1} parent=1 // pred_fallthru
      _
    %1427 = vsyncpa [#allocation4], 1

</llo_original>
